<compile_context>
chip_gen: v6e
topology: v6e:2x2x1
jax: 0.10.0
libtpu: 0.0.40
codegen_flags: <defaults>
</compile_context>

<pallas_src>
import math

import numpy as np
import jax
import jax.numpy as jnp
from jax.experimental import pallas as pl
from jax.experimental.pallas import tpu as pltpu

# ------------------------- model hyper-parameters -------------------------
NTOKEN = 32
NINP = 32
NHEAD = 2
NHID = 64
NLAYERS = 2
SEQ = 8
BATCH = 2
LN_EPS = 1e-5

# ------------------------------ slab layout --------------------------------
LANE = 128
DH = NINP // NHEAD
ROWS = BATCH * SEQ                       # 16 activation rows, ordered (b, s)

# "wide" slab: per layer, 32 weight rows + 1 bias row (padded to 40) of the
# lane-aligned [q_h0|q_h1|k_h0|k_h1|vWo_h0|vWo_h1] projection (6 x 128 lanes).
WIDE_COLS = 3 * NHEAD * LANE             # 768
WIDE_ROWS_PER_LAYER = NINP + 8           # 40
WIDE_ROWS = NLAYERS * WIDE_ROWS_PER_LAYER

# "misc" slab: everything else, 128 lanes wide, static row offsets.
OFF_ENCW = 0                             # [NTOKEN, NINP]  encoder W * sqrt(ninp)
OFF_PE = OFF_ENCW + NTOKEN               # [ROWS,  NINP]   positional enc, (b,s) rows
OFF_MASK = OFF_PE + ROWS                 # [ROWS,  ROWS]   block-diag causal mask
OFF_DECW = OFF_MASK + ROWS               # [NINP,  128]    decoder W, lane-padded
OFF_DECB = OFF_DECW + NINP               # [1,     128]    decoder b (-1e30 in pad lanes)
OFF_LAYER0 = OFF_DECB + 8
LAYER_STRIDE = NINP + NHID + 8           # w1 rows + w2 rows + vector rows
MISC_ROWS = OFF_LAYER0 + NLAYERS * LAYER_STRIDE
# per-layer vector rows (at mbase + NINP + NHID):
#   +0 b1, +1 b2, +2 bo, +3 ln1g, +4 ln1b, +5 ln2g, +6 ln2b


# ------------------------------ spec helpers ------------------------------
def _full_spec(shape):
    nd = len(shape)
    return pl.BlockSpec(shape, lambda *_: (0,) * nd)


# --------------------------- fully fused kernel ---------------------------
def fused_forward_kernel(src_ref, wide_ref, misc_ref, o_ref):
    E, H, dh = NINP, NHEAD, DH
    R = ROWS
    inv_sqrt_dh = 1.0 / math.sqrt(dh)

    # encoder Linear (sqrt(ninp) pre-folded into weight) + positional encoding
    x = jnp.dot(src_ref[...], misc_ref[OFF_ENCW:OFF_ENCW + NTOKEN, 0:E],
                preferred_element_type=jnp.float32)
    x = x + misc_ref[OFF_PE:OFF_PE + R, 0:E]                       # [R, E]
    mask = misc_ref[OFF_MASK:OFF_MASK + R, 0:R]                    # [R, R]

    def layer_norm(z, g, b):
        mu = jnp.mean(z, axis=-1, keepdims=True)
        d = z - mu
        var = jnp.mean(d * d, axis=-1, keepdims=True)
        return d * jax.lax.rsqrt(var + LN_EPS) * g + b

    for l in range(NLAYERS):                 # static unroll, weights resident in VMEM
        wbase = l * WIDE_ROWS_PER_LAYER
        mbase = OFF_LAYER0 + l * LAYER_STRIDE
        vbase = mbase + E + NHID

        # fused lane-aligned projection: [R, E] x [E, 3*H*128]
        qkv = jnp.dot(x, wide_ref[wbase:wbase + E, :],
                      preferred_element_type=jnp.float32)
        qkv = qkv + wide_ref[wbase + E:wbase + E + 1, :]           # [R, 768]

        # causal multi-head attention; all batches handled via block-diag mask,
        # head concat + out-projection folded into the vWo blocks.
        attn = jnp.zeros((R, E), jnp.float32)
        for h in range(H):
            q = qkv[:, h * LANE:(h + 1) * LANE]                    # [R, 128]
            k = qkv[:, (H + h) * LANE:(H + h + 1) * LANE]          # [R, 128]
            vo = qkv[:, (2 * H + h) * LANE:(2 * H + h) * LANE + E]  # [R, E]
            s = jax.lax.dot_general(q, k, (((1,), (1,)), ((), ())),
                                    preferred_element_type=jnp.float32)
            s = s * inv_sqrt_dh + mask                             # [R, R]
            mx = jnp.max(s, axis=-1, keepdims=True)
            p = jnp.exp(s - mx)
            p = p * pl.reciprocal(jnp.sum(p, axis=-1, keepdims=True), approx=True)
            attn = attn + jnp.dot(p, vo, preferred_element_type=jnp.float32)
        attn = attn + misc_ref[vbase + 2:vbase + 3, 0:E]           # out-proj bias

        # norm1(src + attn)
        x = layer_norm(x + attn,
                       misc_ref[vbase + 3:vbase + 4, 0:E],
                       misc_ref[vbase + 4:vbase + 5, 0:E])

        # feed-forward: relu(linear1) -> linear2, norm2(residual)
        f = jnp.dot(x, misc_ref[mbase:mbase + E, 0:NHID],
                    preferred_element_type=jnp.float32)
        f = jnp.maximum(f + misc_ref[vbase:vbase + 1, 0:NHID], 0.0)
        f = jnp.dot(f, misc_ref[mbase + E:mbase + E + NHID, 0:E],
                    preferred_element_type=jnp.float32)
        f = f + misc_ref[vbase + 1:vbase + 2, 0:E]
        x = layer_norm(x + f,
                       misc_ref[vbase + 5:vbase + 6, 0:E],
                       misc_ref[vbase + 6:vbase + 7, 0:E])

    # decoder (lane-padded to 128; padded lanes carry -1e30 bias) + log_softmax
    logits = jnp.dot(x, misc_ref[OFF_DECW:OFF_DECW + E, :],
                     preferred_element_type=jnp.float32)
    logits = logits + misc_ref[OFF_DECB:OFF_DECB + 1, :]           # [R, 128]
    m = jnp.max(logits, axis=-1, keepdims=True)
    sh = logits - m
    lse = jnp.log(jnp.sum(jnp.exp(sh), axis=-1, keepdims=True))
    o_ref[...] = sh - lse                                          # full-width store


# -------------------------------- parameters --------------------------------
def make_positional_encoding(max_len, d_model):
    position = jnp.arange(max_len, dtype=jnp.float32)[:, None]
    div_term = jnp.exp(jnp.arange(0, d_model, 2, dtype=jnp.float32)
                       * (-math.log(10000.0) / d_model))
    pe = jnp.zeros((max_len, d_model), dtype=jnp.float32)
    pe = pe.at[:, 0::2].set(jnp.sin(position * div_term))
    pe = pe.at[:, 1::2].set(jnp.cos(position * div_term))
    return pe


def pack_slabs(p):
    """Pack all parameters into two contiguous f32 slabs (wide / misc)."""
    E, H, dh, S, B = NINP, NHEAD, DH, SEQ, BATCH
    R = B * S

    wide = np.zeros((WIDE_ROWS, WIDE_COLS), np.float32)
    for l in range(NLAYERS):
        base = l * WIDE_ROWS_PER_LAYER
        wq = np.asarray(p["wq"][l]); wk = np.asarray(p["wk"][l])
        wv = np.asarray(p["wv"][l]); wo = np.asarray(p["wo"][l])
        bq = np.asarray(p["bq"][l]); bk = np.asarray(p["bk"][l])
        bv = np.asarray(p["bv"][l])
        for h in range(H):
            c = h * dh
            qb, kb, vb = h * LANE, (H + h) * LANE, (2 * H + h) * LANE
            wide[base:base + E, qb:qb + dh] = wq[:, c:c + dh]
            wide[base + E,      qb:qb + dh] = bq[c:c + dh]
            wide[base:base + E, kb:kb + dh] = wk[:, c:c + dh]
            wide[base + E,      kb:kb + dh] = bk[c:c + dh]
            # fold the per-head output projection into the V projection
            wide[base:base + E, vb:vb + E] = wv[:, c:c + dh] @ wo[c:c + dh, :]
            wide[base + E,      vb:vb + E] = bv[c:c + dh] @ wo[c:c + dh, :]

    misc = np.zeros((MISC_ROWS, LANE), np.float32)
    misc[OFF_ENCW:OFF_ENCW + NTOKEN, :E] = np.asarray(p["enc_w"]) * math.sqrt(NINP)
    misc[OFF_PE:OFF_PE + R, :E] = np.tile(np.asarray(p["pe"][:S]), (B, 1))
    # block-diagonal causal mask over rows ordered (batch, seq)
    idx = np.arange(R)
    same_batch = (idx[:, None] // S) == (idx[None, :] // S)
    causal = (idx[None, :] % S) <= (idx[:, None] % S)
    misc[OFF_MASK:OFF_MASK + R, :R] = np.where(same_batch & causal, 0.0, -1e30)
    misc[OFF_DECW:OFF_DECW + E, :NTOKEN] = np.asarray(p["dec_w"])
    misc[OFF_DECB, :NTOKEN] = np.asarray(p["dec_b"])
    misc[OFF_DECB, NTOKEN:] = -1e30        # padded vocab lanes -> exp() == 0
    for l in range(NLAYERS):
        mbase = OFF_LAYER0 + l * LAYER_STRIDE
        vbase = mbase + E + NHID
        misc[mbase:mbase + E, :NHID] = np.asarray(p["w1"][l])
        misc[mbase + E:mbase + E + NHID, :E] = np.asarray(p["w2"][l])
        misc[vbase + 0, :NHID] = np.asarray(p["b1"][l])
        misc[vbase + 1, :E] = np.asarray(p["b2"][l])
        misc[vbase + 2, :E] = np.asarray(p["bo"][l])
        misc[vbase + 3, :E] = np.asarray(p["ln1g"][l])
        misc[vbase + 4, :E] = np.asarray(p["ln1b"][l])
        misc[vbase + 5, :E] = np.asarray(p["ln2g"][l])
        misc[vbase + 6, :E] = np.asarray(p["ln2b"][l])
    return jnp.asarray(wide), jnp.asarray(misc)


def init_params(key):
    def uniform(k, shape, a):
        return jax.random.uniform(k, shape, jnp.float32, -a, a)

    keys = jax.random.split(key, 2 + NLAYERS)
    params = {
        "enc_w": uniform(keys[0], (NTOKEN, NINP), 0.1),   # Linear(ntoken, ninp, bias=False)
        "dec_w": uniform(keys[1], (NINP, NTOKEN), 0.1),   # Linear(ninp, ntoken)
        "dec_b": jnp.zeros((NTOKEN,), jnp.float32),
        "pe": make_positional_encoding(SEQ, NINP),
    }
    per = {n: [] for n in ("wq", "wk", "wv", "bq", "bk", "bv", "wo", "bo",
                           "ln1g", "ln1b", "w1", "b1", "w2", "b2", "ln2g", "ln2b")}
    for li in range(NLAYERS):
        lk = jax.random.split(keys[2 + li], 10)
        per["wq"].append(uniform(lk[0], (NINP, NINP), 0.05))
        per["wk"].append(uniform(lk[1], (NINP, NINP), 0.05))
        per["wv"].append(uniform(lk[2], (NINP, NINP), 0.05))
        bqkv = uniform(lk[3], (3 * NINP,), 0.02)
        per["bq"].append(bqkv[:NINP])
        per["bk"].append(bqkv[NINP:2 * NINP])
        per["bv"].append(bqkv[2 * NINP:])
        per["wo"].append(uniform(lk[4], (NINP, NINP), 0.05))
        per["bo"].append(uniform(lk[5], (NINP,), 0.02))
        per["ln1g"].append(jnp.ones((NINP,), jnp.float32))
        per["ln1b"].append(jnp.zeros((NINP,), jnp.float32))
        per["w1"].append(uniform(lk[6], (NINP, NHID), 0.05))
        per["b1"].append(uniform(lk[7], (NHID,), 0.02))
        per["w2"].append(uniform(lk[8], (NHID, NINP), 0.05))
        per["b2"].append(uniform(lk[9], (NINP,), 0.02))
        per["ln2g"].append(jnp.ones((NINP,), jnp.float32))
        per["ln2b"].append(jnp.zeros((NINP,), jnp.float32))
    for n, vs in per.items():
        params[n] = jnp.stack(vs, axis=0)
    params["wide"], params["misc"] = pack_slabs(params)
    return params


# --------------------------------- forward ---------------------------------
@jax.jit
def transformer_forward(src, wide, misc):
    S, B, V = src.shape
    # layout plumbing in the wrapper: rows ordered (b, s) so each batch's
    # sequence is a contiguous sublane-aligned row block inside the kernel.
    src2d = src.transpose(1, 0, 2).reshape(B * S, V)

    out_pad = pl.pallas_call(
        fused_forward_kernel,
        out_shape=jax.ShapeDtypeStruct((B * S, LANE), jnp.float32),
        grid=(1,),
        in_specs=[_full_spec(src2d.shape), _full_spec(wide.shape),
                  _full_spec(misc.shape)],
        out_specs=_full_spec((B * S, LANE)),
        compiler_params=pltpu.CompilerParams(dimension_semantics=("arbitrary",)),
    )(src2d, wide, misc)

    # slice off the lane padding, restore [S, B, ntoken]
    return out_pad[:, :NTOKEN].reshape(B, S, NTOKEN).transpose(1, 0, 2)


# ------------------------- pure-JAX reference (check) -------------------------
def reference_forward(src, p):
    S, B, V = src.shape
    E, H, dh = NINP, NHEAD, DH
    hp = dict(precision="highest")
    mask = jnp.where(jnp.tril(jnp.ones((S, S), bool)), 0.0, -1e30).astype(jnp.float32)

    def ln(z, g, b):
        mu = jnp.mean(z, -1, keepdims=True)
        d = z - mu
        return d * jax.lax.rsqrt(jnp.mean(d * d, -1, keepdims=True) + LN_EPS) * g + b

    x = jnp.einsum("sbv,ve->sbe", src, p["enc_w"], **hp) * math.sqrt(NINP)
    x = x + p["pe"][:S][:, None, :]
    for l in range(NLAYERS):
        q = jnp.einsum("sbe,ef->sbf", x, p["wq"][l], **hp) + p["bq"][l]
        k = jnp.einsum("sbe,ef->sbf", x, p["wk"][l], **hp) + p["bk"][l]
        v = jnp.einsum("sbe,ef->sbf", x, p["wv"][l], **hp) + p["bv"][l]
        q = q.reshape(S, B, H, dh); k = k.reshape(S, B, H, dh); v = v.reshape(S, B, H, dh)
        s = jnp.einsum("sbhd,tbhd->bhst", q, k, **hp) / math.sqrt(dh) + mask
        pr = jax.nn.softmax(s, axis=-1)
        a = jnp.einsum("bhst,tbhd->sbhd", pr, v, **hp).reshape(S, B, E)
        a = jnp.einsum("sbe,ef->sbf", a, p["wo"][l], **hp) + p["bo"][l]
        x = ln(x + a, p["ln1g"][l], p["ln1b"][l])
        f = jax.nn.relu(jnp.einsum("sbe,eh->sbh", x, p["w1"][l], **hp) + p["b1"][l])
        f = jnp.einsum("sbh,he->sbe", f, p["w2"][l], **hp) + p["b2"][l]
        x = ln(x + f, p["ln2g"][l], p["ln2b"][l])
    out = jnp.einsum("sbe,ev->sbv", x, p["dec_w"], **hp) + p["dec_b"]
    return jax.nn.log_softmax(out, axis=-1)


# ----------------------------------- main -----------------------------------
if __name__ == "__main__":
    key = jax.random.PRNGKey(0)
    src = jax.random.normal(key, (SEQ, BATCH, NTOKEN), dtype=jnp.float32)
    params = init_params(jax.random.PRNGKey(42))

    out = transformer_forward(src, params["wide"], params["misc"])
    out = jax.block_until_ready(out)

    assert out.shape == (SEQ, BATCH, NTOKEN)
    assert bool(jnp.all(jnp.isfinite(out)))
    # rows of log_softmax should exponentiate-sum to ~1
    assert bool(jnp.allclose(jnp.exp(out).sum(-1), 1.0, atol=1e-4))
    # match the pure-JAX reference implementation
    ref = reference_forward(src, params)
    assert bool(jnp.allclose(out, ref, atol=1e-2)), float(jnp.max(jnp.abs(out - ref)))
    print("KERNEL_OK")
</pallas_src>

<mosaic_0001>
module attributes {stable_mosaic.version = 11 : i64} {
  func.func @fused_forward_kernel(%arg0: i32, %arg1: memref<16x32xf32, #tpu.memory_space<vmem>>, %arg2: memref<80x768xf32, #tpu.memory_space<vmem>>, %arg3: memref<312x128xf32, #tpu.memory_space<vmem>>, %arg4: memref<16x128xf32, #tpu.memory_space<vmem>>) attributes {dimension_semantics = [#tpu.dimension_semantics<arbitrary>], iteration_bounds = array<i64: 1>, scalar_prefetch = 0 : i64, scratch_operands = 0 : i64, tpu.core_type = #tpu.core_type<tc>, window_params = [{pipeline_mode = #tpu.pipeline_mode<synchronous>, transform_indices = @transform_0, window_bounds = array<i64: 16, 32>}, {pipeline_mode = #tpu.pipeline_mode<synchronous>, transform_indices = @transform_1, window_bounds = array<i64: 80, 768>}, {pipeline_mode = #tpu.pipeline_mode<synchronous>, transform_indices = @transform_2, window_bounds = array<i64: 312, 128>}, {pipeline_mode = #tpu.pipeline_mode<synchronous>, transform_indices = @transform_3, window_bounds = array<i64: 16, 128>}]} {
    %c0 = arith.constant 0 : index
    %c0_0 = arith.constant 0 : index
    %0 = vector.load %arg1[%c0, %c0_0] : memref<16x32xf32, #tpu.memory_space<vmem>>, vector<16x32xf32>
    %c0_1 = arith.constant 0 : index
    %c0_2 = arith.constant 0 : index
    %1 = vector.load %arg3[%c0_1, %c0_2] : memref<312x128xf32, #tpu.memory_space<vmem>>, vector<32x32xf32>
    %cst = arith.constant dense<0.000000e+00> : vector<16x32xf32>
    %2 = tpu.matmul %0, %1, %cst {dimension_numbers = #tpu.dot_dimension_numbers<[1], [0], [0], [1], [0, 0, 1, 1], [], []>} : vector<16x32xf32>, vector<32x32xf32>, vector<16x32xf32> -> vector<16x32xf32>
    %c32 = arith.constant 32 : index
    %c0_3 = arith.constant 0 : index
    %3 = vector.load %arg3[%c32, %c0_3] : memref<312x128xf32, #tpu.memory_space<vmem>>, vector<16x32xf32>
    %4 = arith.addf %2, %3 : vector<16x32xf32>
    %c48 = arith.constant 48 : index
    %c0_4 = arith.constant 0 : index
    %5 = vector.load %arg3[%c48, %c0_4] : memref<312x128xf32, #tpu.memory_space<vmem>>, vector<16x16xf32>
    %c0_5 = arith.constant 0 : index
    %c0_6 = arith.constant 0 : index
    %6 = vector.load %arg2[%c0_5, %c0_6] : memref<80x768xf32, #tpu.memory_space<vmem>>, vector<32x768xf32>
    %cst_7 = arith.constant dense<0.000000e+00> : vector<16x768xf32>
    %7 = tpu.matmul %4, %6, %cst_7 {dimension_numbers = #tpu.dot_dimension_numbers<[1], [0], [0], [1], [0, 0, 1, 1], [], []>} : vector<16x32xf32>, vector<32x768xf32>, vector<16x768xf32> -> vector<16x768xf32>
    %c32_8 = arith.constant 32 : index
    %c0_9 = arith.constant 0 : index
    %8 = vector.load %arg2[%c32_8, %c0_9] : memref<80x768xf32, #tpu.memory_space<vmem>>, vector<1x768xf32>
    %9 = vector.broadcast %8 : vector<1x768xf32> to vector<16x768xf32>
    %10 = arith.addf %7, %9 : vector<16x768xf32>
    %cst_10 = arith.constant 0.000000e+00 : f32
    %11 = vector.broadcast %cst_10 : f32 to vector<16x32xf32>
    %12 = vector.extract_strided_slice %10 {offsets = [0, 0], sizes = [16, 128], strides = [1, 1]} : vector<16x768xf32> to vector<16x128xf32>
    %13 = vector.extract_strided_slice %10 {offsets = [0, 256], sizes = [16, 128], strides = [1, 1]} : vector<16x768xf32> to vector<16x128xf32>
    %14 = vector.extract_strided_slice %10 {offsets = [0, 512], sizes = [16, 32], strides = [1, 1]} : vector<16x768xf32> to vector<16x32xf32>
    %cst_11 = arith.constant dense<0.000000e+00> : vector<16x16xf32>
    %15 = tpu.matmul %12, %13, %cst_11 {dimension_numbers = #tpu.dot_dimension_numbers<[1], [1], [0], [0], [0, 0, 1, 0], [], []>} : vector<16x128xf32>, vector<16x128xf32>, vector<16x16xf32> -> vector<16x16xf32>
    %cst_12 = arith.constant 2.500000e-01 : f32
    %16 = vector.broadcast %cst_12 : f32 to vector<16x16xf32>
    %17 = arith.mulf %15, %16 : vector<16x16xf32>
    %18 = arith.addf %17, %5 : vector<16x16xf32>
    %cst_13 = arith.constant dense<0xFF800000> : vector<16xf32>
    %19 = vector.multi_reduction <maximumf>, %18, %cst_13 [1] : vector<16x16xf32> to vector<16xf32>
    %20 = vector.shape_cast %19 : vector<16xf32> to vector<16x1xf32>
    %21 = vector.broadcast %20 : vector<16x1xf32> to vector<16x16xf32>
    %22 = arith.subf %18, %21 : vector<16x16xf32>
    %23 = math.exp %22 : vector<16x16xf32>
    %cst_14 = arith.constant dense<0.000000e+00> : vector<16xf32>
    %24 = vector.multi_reduction <add>, %23, %cst_14 [1] : vector<16x16xf32> to vector<16xf32>
    %25 = vector.shape_cast %24 : vector<16xf32> to vector<16x1xf32>
    %26 = tpu.reciprocal %25 {approx = true} : vector<16x1xf32> -> vector<16x1xf32>
    %27 = vector.broadcast %26 : vector<16x1xf32> to vector<16x16xf32>
    %28 = arith.mulf %23, %27 : vector<16x16xf32>
    %cst_15 = arith.constant dense<0.000000e+00> : vector<16x32xf32>
    %29 = tpu.matmul %28, %14, %cst_15 {dimension_numbers = #tpu.dot_dimension_numbers<[1], [0], [0], [1], [0, 0, 1, 1], [], []>} : vector<16x16xf32>, vector<16x32xf32>, vector<16x32xf32> -> vector<16x32xf32>
    %30 = arith.addf %11, %29 : vector<16x32xf32>
    %31 = vector.extract_strided_slice %10 {offsets = [0, 128], sizes = [16, 128], strides = [1, 1]} : vector<16x768xf32> to vector<16x128xf32>
    %32 = vector.extract_strided_slice %10 {offsets = [0, 384], sizes = [16, 128], strides = [1, 1]} : vector<16x768xf32> to vector<16x128xf32>
    %33 = vector.extract_strided_slice %10 {offsets = [0, 640], sizes = [16, 32], strides = [1, 1]} : vector<16x768xf32> to vector<16x32xf32>
    %cst_16 = arith.constant dense<0.000000e+00> : vector<16x16xf32>
    %34 = tpu.matmul %31, %32, %cst_16 {dimension_numbers = #tpu.dot_dimension_numbers<[1], [1], [0], [0], [0, 0, 1, 0], [], []>} : vector<16x128xf32>, vector<16x128xf32>, vector<16x16xf32> -> vector<16x16xf32>
    %cst_17 = arith.constant 2.500000e-01 : f32
    %35 = vector.broadcast %cst_17 : f32 to vector<16x16xf32>
    %36 = arith.mulf %34, %35 : vector<16x16xf32>
    %37 = arith.addf %36, %5 : vector<16x16xf32>
    %cst_18 = arith.constant dense<0xFF800000> : vector<16xf32>
    %38 = vector.multi_reduction <maximumf>, %37, %cst_18 [1] : vector<16x16xf32> to vector<16xf32>
    %39 = vector.shape_cast %38 : vector<16xf32> to vector<16x1xf32>
    %40 = vector.broadcast %39 : vector<16x1xf32> to vector<16x16xf32>
    %41 = arith.subf %37, %40 : vector<16x16xf32>
    %42 = math.exp %41 : vector<16x16xf32>
    %cst_19 = arith.constant dense<0.000000e+00> : vector<16xf32>
    %43 = vector.multi_reduction <add>, %42, %cst_19 [1] : vector<16x16xf32> to vector<16xf32>
    %44 = vector.shape_cast %43 : vector<16xf32> to vector<16x1xf32>
    %45 = tpu.reciprocal %44 {approx = true} : vector<16x1xf32> -> vector<16x1xf32>
    %46 = vector.broadcast %45 : vector<16x1xf32> to vector<16x16xf32>
    %47 = arith.mulf %42, %46 : vector<16x16xf32>
    %cst_20 = arith.constant dense<0.000000e+00> : vector<16x32xf32>
    %48 = tpu.matmul %47, %33, %cst_20 {dimension_numbers = #tpu.dot_dimension_numbers<[1], [0], [0], [1], [0, 0, 1, 1], [], []>} : vector<16x16xf32>, vector<16x32xf32>, vector<16x32xf32> -> vector<16x32xf32>
    %49 = arith.addf %30, %48 : vector<16x32xf32>
    %c202 = arith.constant 202 : index
    %c0_21 = arith.constant 0 : index
    %50 = vector.load %arg3[%c202, %c0_21] : memref<312x128xf32, #tpu.memory_space<vmem>>, vector<1x32xf32>
    %51 = vector.broadcast %50 : vector<1x32xf32> to vector<16x32xf32>
    %52 = arith.addf %49, %51 : vector<16x32xf32>
    %53 = arith.addf %4, %52 : vector<16x32xf32>
    %c203 = arith.constant 203 : index
    %c0_22 = arith.constant 0 : index
    %54 = vector.load %arg3[%c203, %c0_22] : memref<312x128xf32, #tpu.memory_space<vmem>>, vector<1x32xf32>
    %c204 = arith.constant 204 : index
    %c0_23 = arith.constant 0 : index
    %55 = vector.load %arg3[%c204, %c0_23] : memref<312x128xf32, #tpu.memory_space<vmem>>, vector<1x32xf32>
    %cst_24 = arith.constant dense<0.000000e+00> : vector<16xf32>
    %56 = vector.multi_reduction <add>, %53, %cst_24 [1] : vector<16x32xf32> to vector<16xf32>
    %57 = vector.shape_cast %56 : vector<16xf32> to vector<16x1xf32>
    %cst_25 = arith.constant 3.200000e+01 : f32
    %58 = vector.broadcast %cst_25 : f32 to vector<16x1xf32>
    %59 = arith.divf %57, %58 : vector<16x1xf32>
    %60 = vector.broadcast %59 : vector<16x1xf32> to vector<16x32xf32>
    %61 = arith.subf %53, %60 : vector<16x32xf32>
    %62 = arith.mulf %61, %61 : vector<16x32xf32>
    %cst_26 = arith.constant dense<0.000000e+00> : vector<16xf32>
    %63 = vector.multi_reduction <add>, %62, %cst_26 [1] : vector<16x32xf32> to vector<16xf32>
    %64 = vector.shape_cast %63 : vector<16xf32> to vector<16x1xf32>
    %cst_27 = arith.constant 3.200000e+01 : f32
    %65 = vector.broadcast %cst_27 : f32 to vector<16x1xf32>
    %66 = arith.divf %64, %65 : vector<16x1xf32>
    %cst_28 = arith.constant 9.99999974E-6 : f32
    %67 = vector.broadcast %cst_28 : f32 to vector<16x1xf32>
    %68 = arith.addf %66, %67 : vector<16x1xf32>
    %69 = math.rsqrt %68 : vector<16x1xf32>
    %70 = vector.broadcast %69 : vector<16x1xf32> to vector<16x32xf32>
    %71 = arith.mulf %61, %70 : vector<16x32xf32>
    %72 = vector.broadcast %54 : vector<1x32xf32> to vector<16x32xf32>
    %73 = arith.mulf %71, %72 : vector<16x32xf32>
    %74 = vector.broadcast %55 : vector<1x32xf32> to vector<16x32xf32>
    %75 = arith.addf %73, %74 : vector<16x32xf32>
    %c104 = arith.constant 104 : index
    %c0_29 = arith.constant 0 : index
    %76 = vector.load %arg3[%c104, %c0_29] : memref<312x128xf32, #tpu.memory_space<vmem>>, vector<32x64xf32>
    %cst_30 = arith.constant dense<0.000000e+00> : vector<16x64xf32>
    %77 = tpu.matmul %75, %76, %cst_30 {dimension_numbers = #tpu.dot_dimension_numbers<[1], [0], [0], [1], [0, 0, 1, 1], [], []>} : vector<16x32xf32>, vector<32x64xf32>, vector<16x64xf32> -> vector<16x64xf32>
    %c200 = arith.constant 200 : index
    %c0_31 = arith.constant 0 : index
    %78 = vector.load %arg3[%c200, %c0_31] : memref<312x128xf32, #tpu.memory_space<vmem>>, vector<1x64xf32>
    %79 = vector.broadcast %78 : vector<1x64xf32> to vector<16x64xf32>
    %80 = arith.addf %77, %79 : vector<16x64xf32>
    %cst_32 = arith.constant 0.000000e+00 : f32
    %81 = vector.broadcast %cst_32 : f32 to vector<16x64xf32>
    %82 = arith.maximumf %80, %81 : vector<16x64xf32>
    %c136 = arith.constant 136 : index
    %c0_33 = arith.constant 0 : index
    %83 = vector.load %arg3[%c136, %c0_33] : memref<312x128xf32, #tpu.memory_space<vmem>>, vector<64x32xf32>
    %cst_34 = arith.constant dense<0.000000e+00> : vector<16x32xf32>
    %84 = tpu.matmul %82, %83, %cst_34 {dimension_numbers = #tpu.dot_dimension_numbers<[1], [0], [0], [1], [0, 0, 1, 1], [], []>} : vector<16x64xf32>, vector<64x32xf32>, vector<16x32xf32> -> vector<16x32xf32>
    %c201 = arith.constant 201 : index
    %c0_35 = arith.constant 0 : index
    %85 = vector.load %arg3[%c201, %c0_35] : memref<312x128xf32, #tpu.memory_space<vmem>>, vector<1x32xf32>
    %86 = vector.broadcast %85 : vector<1x32xf32> to vector<16x32xf32>
    %87 = arith.addf %84, %86 : vector<16x32xf32>
    %88 = arith.addf %75, %87 : vector<16x32xf32>
    %c205 = arith.constant 205 : index
    %c0_36 = arith.constant 0 : index
    %89 = vector.load %arg3[%c205, %c0_36] : memref<312x128xf32, #tpu.memory_space<vmem>>, vector<1x32xf32>
    %c206 = arith.constant 206 : index
    %c0_37 = arith.constant 0 : index
    %90 = vector.load %arg3[%c206, %c0_37] : memref<312x128xf32, #tpu.memory_space<vmem>>, vector<1x32xf32>
    %cst_38 = arith.constant dense<0.000000e+00> : vector<16xf32>
    %91 = vector.multi_reduction <add>, %88, %cst_38 [1] : vector<16x32xf32> to vector<16xf32>
    %92 = vector.shape_cast %91 : vector<16xf32> to vector<16x1xf32>
    %cst_39 = arith.constant 3.200000e+01 : f32
    %93 = vector.broadcast %cst_39 : f32 to vector<16x1xf32>
    %94 = arith.divf %92, %93 : vector<16x1xf32>
    %95 = vector.broadcast %94 : vector<16x1xf32> to vector<16x32xf32>
    %96 = arith.subf %88, %95 : vector<16x32xf32>
    %97 = arith.mulf %96, %96 : vector<16x32xf32>
    %cst_40 = arith.constant dense<0.000000e+00> : vector<16xf32>
    %98 = vector.multi_reduction <add>, %97, %cst_40 [1] : vector<16x32xf32> to vector<16xf32>
    %99 = vector.shape_cast %98 : vector<16xf32> to vector<16x1xf32>
    %cst_41 = arith.constant 3.200000e+01 : f32
    %100 = vector.broadcast %cst_41 : f32 to vector<16x1xf32>
    %101 = arith.divf %99, %100 : vector<16x1xf32>
    %cst_42 = arith.constant 9.99999974E-6 : f32
    %102 = vector.broadcast %cst_42 : f32 to vector<16x1xf32>
    %103 = arith.addf %101, %102 : vector<16x1xf32>
    %104 = math.rsqrt %103 : vector<16x1xf32>
    %105 = vector.broadcast %104 : vector<16x1xf32> to vector<16x32xf32>
    %106 = arith.mulf %96, %105 : vector<16x32xf32>
    %107 = vector.broadcast %89 : vector<1x32xf32> to vector<16x32xf32>
    %108 = arith.mulf %106, %107 : vector<16x32xf32>
    %109 = vector.broadcast %90 : vector<1x32xf32> to vector<16x32xf32>
    %110 = arith.addf %108, %109 : vector<16x32xf32>
    %c40 = arith.constant 40 : index
    %c0_43 = arith.constant 0 : index
    %111 = vector.load %arg2[%c40, %c0_43] : memref<80x768xf32, #tpu.memory_space<vmem>>, vector<32x768xf32>
    %cst_44 = arith.constant dense<0.000000e+00> : vector<16x768xf32>
    %112 = tpu.matmul %110, %111, %cst_44 {dimension_numbers = #tpu.dot_dimension_numbers<[1], [0], [0], [1], [0, 0, 1, 1], [], []>} : vector<16x32xf32>, vector<32x768xf32>, vector<16x768xf32> -> vector<16x768xf32>
    %c72 = arith.constant 72 : index
    %c0_45 = arith.constant 0 : index
    %113 = vector.load %arg2[%c72, %c0_45] : memref<80x768xf32, #tpu.memory_space<vmem>>, vector<1x768xf32>
    %114 = vector.broadcast %113 : vector<1x768xf32> to vector<16x768xf32>
    %115 = arith.addf %112, %114 : vector<16x768xf32>
    %cst_46 = arith.constant 0.000000e+00 : f32
    %116 = vector.broadcast %cst_46 : f32 to vector<16x32xf32>
    %117 = vector.extract_strided_slice %115 {offsets = [0, 0], sizes = [16, 128], strides = [1, 1]} : vector<16x768xf32> to vector<16x128xf32>
    %118 = vector.extract_strided_slice %115 {offsets = [0, 256], sizes = [16, 128], strides = [1, 1]} : vector<16x768xf32> to vector<16x128xf32>
    %119 = vector.extract_strided_slice %115 {offsets = [0, 512], sizes = [16, 32], strides = [1, 1]} : vector<16x768xf32> to vector<16x32xf32>
    %cst_47 = arith.constant dense<0.000000e+00> : vector<16x16xf32>
    %120 = tpu.matmul %117, %118, %cst_47 {dimension_numbers = #tpu.dot_dimension_numbers<[1], [1], [0], [0], [0, 0, 1, 0], [], []>} : vector<16x128xf32>, vector<16x128xf32>, vector<16x16xf32> -> vector<16x16xf32>
    %cst_48 = arith.constant 2.500000e-01 : f32
    %121 = vector.broadcast %cst_48 : f32 to vector<16x16xf32>
    %122 = arith.mulf %120, %121 : vector<16x16xf32>
    %123 = arith.addf %122, %5 : vector<16x16xf32>
    %cst_49 = arith.constant dense<0xFF800000> : vector<16xf32>
    %124 = vector.multi_reduction <maximumf>, %123, %cst_49 [1] : vector<16x16xf32> to vector<16xf32>
    %125 = vector.shape_cast %124 : vector<16xf32> to vector<16x1xf32>
    %126 = vector.broadcast %125 : vector<16x1xf32> to vector<16x16xf32>
    %127 = arith.subf %123, %126 : vector<16x16xf32>
    %128 = math.exp %127 : vector<16x16xf32>
    %cst_50 = arith.constant dense<0.000000e+00> : vector<16xf32>
    %129 = vector.multi_reduction <add>, %128, %cst_50 [1] : vector<16x16xf32> to vector<16xf32>
    %130 = vector.shape_cast %129 : vector<16xf32> to vector<16x1xf32>
    %131 = tpu.reciprocal %130 {approx = true} : vector<16x1xf32> -> vector<16x1xf32>
    %132 = vector.broadcast %131 : vector<16x1xf32> to vector<16x16xf32>
    %133 = arith.mulf %128, %132 : vector<16x16xf32>
    %cst_51 = arith.constant dense<0.000000e+00> : vector<16x32xf32>
    %134 = tpu.matmul %133, %119, %cst_51 {dimension_numbers = #tpu.dot_dimension_numbers<[1], [0], [0], [1], [0, 0, 1, 1], [], []>} : vector<16x16xf32>, vector<16x32xf32>, vector<16x32xf32> -> vector<16x32xf32>
    %135 = arith.addf %116, %134 : vector<16x32xf32>
    %136 = vector.extract_strided_slice %115 {offsets = [0, 128], sizes = [16, 128], strides = [1, 1]} : vector<16x768xf32> to vector<16x128xf32>
    %137 = vector.extract_strided_slice %115 {offsets = [0, 384], sizes = [16, 128], strides = [1, 1]} : vector<16x768xf32> to vector<16x128xf32>
    %138 = vector.extract_strided_slice %115 {offsets = [0, 640], sizes = [16, 32], strides = [1, 1]} : vector<16x768xf32> to vector<16x32xf32>
    %cst_52 = arith.constant dense<0.000000e+00> : vector<16x16xf32>
    %139 = tpu.matmul %136, %137, %cst_52 {dimension_numbers = #tpu.dot_dimension_numbers<[1], [1], [0], [0], [0, 0, 1, 0], [], []>} : vector<16x128xf32>, vector<16x128xf32>, vector<16x16xf32> -> vector<16x16xf32>
    %cst_53 = arith.constant 2.500000e-01 : f32
    %140 = vector.broadcast %cst_53 : f32 to vector<16x16xf32>
    %141 = arith.mulf %139, %140 : vector<16x16xf32>
    %142 = arith.addf %141, %5 : vector<16x16xf32>
    %cst_54 = arith.constant dense<0xFF800000> : vector<16xf32>
    %143 = vector.multi_reduction <maximumf>, %142, %cst_54 [1] : vector<16x16xf32> to vector<16xf32>
    %144 = vector.shape_cast %143 : vector<16xf32> to vector<16x1xf32>
    %145 = vector.broadcast %144 : vector<16x1xf32> to vector<16x16xf32>
    %146 = arith.subf %142, %145 : vector<16x16xf32>
    %147 = math.exp %146 : vector<16x16xf32>
    %cst_55 = arith.constant dense<0.000000e+00> : vector<16xf32>
    %148 = vector.multi_reduction <add>, %147, %cst_55 [1] : vector<16x16xf32> to vector<16xf32>
    %149 = vector.shape_cast %148 : vector<16xf32> to vector<16x1xf32>
    %150 = tpu.reciprocal %149 {approx = true} : vector<16x1xf32> -> vector<16x1xf32>
    %151 = vector.broadcast %150 : vector<16x1xf32> to vector<16x16xf32>
    %152 = arith.mulf %147, %151 : vector<16x16xf32>
    %cst_56 = arith.constant dense<0.000000e+00> : vector<16x32xf32>
    %153 = tpu.matmul %152, %138, %cst_56 {dimension_numbers = #tpu.dot_dimension_numbers<[1], [0], [0], [1], [0, 0, 1, 1], [], []>} : vector<16x16xf32>, vector<16x32xf32>, vector<16x32xf32> -> vector<16x32xf32>
    %154 = arith.addf %135, %153 : vector<16x32xf32>
    %c306 = arith.constant 306 : index
    %c0_57 = arith.constant 0 : index
    %155 = vector.load %arg3[%c306, %c0_57] : memref<312x128xf32, #tpu.memory_space<vmem>>, vector<1x32xf32>
    %156 = vector.broadcast %155 : vector<1x32xf32> to vector<16x32xf32>
    %157 = arith.addf %154, %156 : vector<16x32xf32>
    %158 = arith.addf %110, %157 : vector<16x32xf32>
    %c307 = arith.constant 307 : index
    %c0_58 = arith.constant 0 : index
    %159 = vector.load %arg3[%c307, %c0_58] : memref<312x128xf32, #tpu.memory_space<vmem>>, vector<1x32xf32>
    %c308 = arith.constant 308 : index
    %c0_59 = arith.constant 0 : index
    %160 = vector.load %arg3[%c308, %c0_59] : memref<312x128xf32, #tpu.memory_space<vmem>>, vector<1x32xf32>
    %cst_60 = arith.constant dense<0.000000e+00> : vector<16xf32>
    %161 = vector.multi_reduction <add>, %158, %cst_60 [1] : vector<16x32xf32> to vector<16xf32>
    %162 = vector.shape_cast %161 : vector<16xf32> to vector<16x1xf32>
    %cst_61 = arith.constant 3.200000e+01 : f32
    %163 = vector.broadcast %cst_61 : f32 to vector<16x1xf32>
    %164 = arith.divf %162, %163 : vector<16x1xf32>
    %165 = vector.broadcast %164 : vector<16x1xf32> to vector<16x32xf32>
    %166 = arith.subf %158, %165 : vector<16x32xf32>
    %167 = arith.mulf %166, %166 : vector<16x32xf32>
    %cst_62 = arith.constant dense<0.000000e+00> : vector<16xf32>
    %168 = vector.multi_reduction <add>, %167, %cst_62 [1] : vector<16x32xf32> to vector<16xf32>
    %169 = vector.shape_cast %168 : vector<16xf32> to vector<16x1xf32>
    %cst_63 = arith.constant 3.200000e+01 : f32
    %170 = vector.broadcast %cst_63 : f32 to vector<16x1xf32>
    %171 = arith.divf %169, %170 : vector<16x1xf32>
    %cst_64 = arith.constant 9.99999974E-6 : f32
    %172 = vector.broadcast %cst_64 : f32 to vector<16x1xf32>
    %173 = arith.addf %171, %172 : vector<16x1xf32>
    %174 = math.rsqrt %173 : vector<16x1xf32>
    %175 = vector.broadcast %174 : vector<16x1xf32> to vector<16x32xf32>
    %176 = arith.mulf %166, %175 : vector<16x32xf32>
    %177 = vector.broadcast %159 : vector<1x32xf32> to vector<16x32xf32>
    %178 = arith.mulf %176, %177 : vector<16x32xf32>
    %179 = vector.broadcast %160 : vector<1x32xf32> to vector<16x32xf32>
    %180 = arith.addf %178, %179 : vector<16x32xf32>
    %c208 = arith.constant 208 : index
    %c0_65 = arith.constant 0 : index
    %181 = vector.load %arg3[%c208, %c0_65] : memref<312x128xf32, #tpu.memory_space<vmem>>, vector<32x64xf32>
    %cst_66 = arith.constant dense<0.000000e+00> : vector<16x64xf32>
    %182 = tpu.matmul %180, %181, %cst_66 {dimension_numbers = #tpu.dot_dimension_numbers<[1], [0], [0], [1], [0, 0, 1, 1], [], []>} : vector<16x32xf32>, vector<32x64xf32>, vector<16x64xf32> -> vector<16x64xf32>
    %c304 = arith.constant 304 : index
    %c0_67 = arith.constant 0 : index
    %183 = vector.load %arg3[%c304, %c0_67] : memref<312x128xf32, #tpu.memory_space<vmem>>, vector<1x64xf32>
    %184 = vector.broadcast %183 : vector<1x64xf32> to vector<16x64xf32>
    %185 = arith.addf %182, %184 : vector<16x64xf32>
    %cst_68 = arith.constant 0.000000e+00 : f32
    %186 = vector.broadcast %cst_68 : f32 to vector<16x64xf32>
    %187 = arith.maximumf %185, %186 : vector<16x64xf32>
    %c240 = arith.constant 240 : index
    %c0_69 = arith.constant 0 : index
    %188 = vector.load %arg3[%c240, %c0_69] : memref<312x128xf32, #tpu.memory_space<vmem>>, vector<64x32xf32>
    %cst_70 = arith.constant dense<0.000000e+00> : vector<16x32xf32>
    %189 = tpu.matmul %187, %188, %cst_70 {dimension_numbers = #tpu.dot_dimension_numbers<[1], [0], [0], [1], [0, 0, 1, 1], [], []>} : vector<16x64xf32>, vector<64x32xf32>, vector<16x32xf32> -> vector<16x32xf32>
    %c305 = arith.constant 305 : index
    %c0_71 = arith.constant 0 : index
    %190 = vector.load %arg3[%c305, %c0_71] : memref<312x128xf32, #tpu.memory_space<vmem>>, vector<1x32xf32>
    %191 = vector.broadcast %190 : vector<1x32xf32> to vector<16x32xf32>
    %192 = arith.addf %189, %191 : vector<16x32xf32>
    %193 = arith.addf %180, %192 : vector<16x32xf32>
    %c309 = arith.constant 309 : index
    %c0_72 = arith.constant 0 : index
    %194 = vector.load %arg3[%c309, %c0_72] : memref<312x128xf32, #tpu.memory_space<vmem>>, vector<1x32xf32>
    %c310 = arith.constant 310 : index
    %c0_73 = arith.constant 0 : index
    %195 = vector.load %arg3[%c310, %c0_73] : memref<312x128xf32, #tpu.memory_space<vmem>>, vector<1x32xf32>
    %cst_74 = arith.constant dense<0.000000e+00> : vector<16xf32>
    %196 = vector.multi_reduction <add>, %193, %cst_74 [1] : vector<16x32xf32> to vector<16xf32>
    %197 = vector.shape_cast %196 : vector<16xf32> to vector<16x1xf32>
    %cst_75 = arith.constant 3.200000e+01 : f32
    %198 = vector.broadcast %cst_75 : f32 to vector<16x1xf32>
    %199 = arith.divf %197, %198 : vector<16x1xf32>
    %200 = vector.broadcast %199 : vector<16x1xf32> to vector<16x32xf32>
    %201 = arith.subf %193, %200 : vector<16x32xf32>
    %202 = arith.mulf %201, %201 : vector<16x32xf32>
    %cst_76 = arith.constant dense<0.000000e+00> : vector<16xf32>
    %203 = vector.multi_reduction <add>, %202, %cst_76 [1] : vector<16x32xf32> to vector<16xf32>
    %204 = vector.shape_cast %203 : vector<16xf32> to vector<16x1xf32>
    %cst_77 = arith.constant 3.200000e+01 : f32
    %205 = vector.broadcast %cst_77 : f32 to vector<16x1xf32>
    %206 = arith.divf %204, %205 : vector<16x1xf32>
    %cst_78 = arith.constant 9.99999974E-6 : f32
    %207 = vector.broadcast %cst_78 : f32 to vector<16x1xf32>
    %208 = arith.addf %206, %207 : vector<16x1xf32>
    %209 = math.rsqrt %208 : vector<16x1xf32>
    %210 = vector.broadcast %209 : vector<16x1xf32> to vector<16x32xf32>
    %211 = arith.mulf %201, %210 : vector<16x32xf32>
    %212 = vector.broadcast %194 : vector<1x32xf32> to vector<16x32xf32>
    %213 = arith.mulf %211, %212 : vector<16x32xf32>
    %214 = vector.broadcast %195 : vector<1x32xf32> to vector<16x32xf32>
    %215 = arith.addf %213, %214 : vector<16x32xf32>
    %c64 = arith.constant 64 : index
    %c0_79 = arith.constant 0 : index
    %216 = vector.load %arg3[%c64, %c0_79] : memref<312x128xf32, #tpu.memory_space<vmem>>, vector<32x128xf32>
    %cst_80 = arith.constant dense<0.000000e+00> : vector<16x128xf32>
    %217 = tpu.matmul %215, %216, %cst_80 {dimension_numbers = #tpu.dot_dimension_numbers<[1], [0], [0], [1], [0, 0, 1, 1], [], []>} : vector<16x32xf32>, vector<32x128xf32>, vector<16x128xf32> -> vector<16x128xf32>
    %c96 = arith.constant 96 : index
    %c0_81 = arith.constant 0 : index
    %218 = vector.load %arg3[%c96, %c0_81] : memref<312x128xf32, #tpu.memory_space<vmem>>, vector<1x128xf32>
    %219 = vector.broadcast %218 : vector<1x128xf32> to vector<16x128xf32>
    %220 = arith.addf %217, %219 : vector<16x128xf32>
    %cst_82 = arith.constant dense<0xFF800000> : vector<16xf32>
    %221 = vector.multi_reduction <maximumf>, %220, %cst_82 [1] : vector<16x128xf32> to vector<16xf32>
    %222 = vector.shape_cast %221 : vector<16xf32> to vector<16x1xf32>
    %223 = vector.broadcast %222 : vector<16x1xf32> to vector<16x128xf32>
    %224 = arith.subf %220, %223 : vector<16x128xf32>
    %225 = math.exp %224 : vector<16x128xf32>
    %cst_83 = arith.constant dense<0.000000e+00> : vector<16xf32>
    %226 = vector.multi_reduction <add>, %225, %cst_83 [1] : vector<16x128xf32> to vector<16xf32>
    %227 = vector.shape_cast %226 : vector<16xf32> to vector<16x1xf32>
    %228 = math.log %227 : vector<16x1xf32>
    %229 = vector.broadcast %228 : vector<16x1xf32> to vector<16x128xf32>
    %230 = arith.subf %224, %229 : vector<16x128xf32>
    %c0_84 = arith.constant 0 : index
    %c0_85 = arith.constant 0 : index
    %231 = vector.load %arg4[%c0_84, %c0_85] : memref<16x128xf32, #tpu.memory_space<vmem>>, vector<16x128xf32>
    tpu.vector_store %arg4[%c0_84, %c0_85], %230 {strides = array<i32>} : memref<16x128xf32, #tpu.memory_space<vmem>>, vector<16x128xf32>,
    return
  }
  func.func @transform_0(%arg0: i32) -> (i32, i32) {
    %c0_i32 = arith.constant 0 : i32
    %c0_i32_0 = arith.constant 0 : i32
    %c0_i32_1 = arith.constant 0 : i32
    return %c0_i32, %c0_i32_0 : i32, i32
  }
  func.func @transform_1(%arg0: i32) -> (i32, i32) {
    %c0_i32 = arith.constant 0 : i32
    %c0_i32_0 = arith.constant 0 : i32
    %c0_i32_1 = arith.constant 0 : i32
    return %c0_i32, %c0_i32_0 : i32, i32
  }
  func.func @transform_2(%arg0: i32) -> (i32, i32) {
    %c0_i32 = arith.constant 0 : i32
    %c0_i32_0 = arith.constant 0 : i32
    %c0_i32_1 = arith.constant 0 : i32
    return %c0_i32, %c0_i32_0 : i32, i32
  }
  func.func @transform_3(%arg0: i32) -> (i32, i32) {
    %c0_i32 = arith.constant 0 : i32
    %c0_i32_0 = arith.constant 0 : i32
    %c0_i32_1 = arith.constant 0 : i32
    return %c0_i32, %c0_i32_0 : i32, i32
  }
}

</mosaic_0001>

<llo_original>
// kernel: transformer_forward.1
$region0: #{transformer_forward.1}
  #allocation0 [shape = 'u32[]', space=smem, size = 0x4, offset = 0x4, fixed_abs, tag = 'smem constant byte address 0x4 - core index']
  #allocation1 [shape = 'u32[144,128]{1,0:T(1,128)}', space=vmem, size = 0x12000, scoped, tag = 'internal scratch']
  %s0 = inlined_call_operand.vmem [shape: f32[16,32], index: 0, kind: input, shape index: {}]
  %s1 = inlined_call_operand.hbm [shape: f32[80,768], index: 1, kind: input, shape index: {}]
  %s2 = inlined_call_operand.hbm [shape: f32[312,128], index: 2, kind: input, shape index: {}]
  %s3 = inlined_call_operand.vmem [shape: f32[16,128], index: 3, kind: output, shape index: {}]
  %s4 = sld [smem:[#allocation0]]
  $region30: #{transformer_forward.1} parent=0
    _
  %s6 = ssub.s32 1, %s4
  %s7 = scalar_select 0, %s6, %s4
  $region1: #{transformer_forward.1} parent=0
    #allocation2 [shape = 'u8[245760]{0}', space=vmem, size = 0x3c000, scoped, tag = 'input window, operand 1, single buffered']
    #allocation3 [shape = 's32[1]{0}', space=sflag, size = 0x4, scoped, tag = 'scoped memory for transformer_forward.1']
    #allocation4 [shape = 'u8[159744]{0}', space=vmem, size = 0x27000, scoped, tag = 'input window, operand 2, single buffered']
    #allocation5 [shape = 's32[1]{0}', space=sflag, size = 0x4, scoped, tag = 'scoped memory for transformer_forward.1']
    %8 = vsyncpa [#allocation3], 0
    %9 = vsyncpa [#allocation5], 0
    // Predicated region
    $region2: #{transformer_forward.1} parent=1 // pred_check
      _
    $region3: #{transformer_forward.1} parent=1 // pred_check_branch
      %11 = sbr.rel (0) target = $region5
    $region4: #{transformer_forward.1} parent=1 // pred_region
      _
    $region5: #{transformer_forward.1} parent=1 // pred_fallthru
      _
    // Predicated region
    $region6: #{transformer_forward.1} parent=1 // pred_check
      _
    $region7: #{transformer_forward.1} parent=1 // pred_check_branch
      %13 = sbr.rel (0) target = $region9
    $region8: #{transformer_forward.1} parent=1 // pred_region
      %s15 = ssub.s32 7680, 7680
      %16 = vsyncadd [#allocation3], %s15
      %s17 = sshll.u32 [#allocation2], 4
      %s18 = int_to_ptr.vmem [resolvable:$true] %s17
      %23 = dma.hbm_to_vmem [thread:$0]  %s1, 7680, %s18, [#allocation3], 768, 768, 48
    $region9: #{transformer_forward.1} parent=1 // pred_fallthru
      _
    // Predicated region
    $region10: #{transformer_forward.1} parent=1 // pred_check
      _
    $region11: #{transformer_forward.1} parent=1 // pred_check_branch
      %25 = sbr.rel (0) target = $region13
    $region12: #{transformer_forward.1} parent=1 // pred_region
      %s27 = ssub.s32 4992, 4992
      %28 = vsyncadd [#allocation5], %s27
      %s29 = sshll.u32 [#allocation4], 4
      %s30 = int_to_ptr.vmem [resolvable:$true] %s29
      %35 = dma.hbm_to_vmem [thread:$0]  %s2, 4992, %s30, [#allocation5], 128, 128, 8
    $region13: #{transformer_forward.1} parent=1 // pred_fallthru
      _
    // Predicated region
    $region14: #{transformer_forward.1} parent=1 // pred_check
      _
    $region15: #{transformer_forward.1} parent=1 // pred_check_branch
      %37 = sbr.rel (0) target = $region17
    $region16: #{transformer_forward.1} parent=1 // pred_region
      %38 = dma.done [#allocation3], 7680
    $region17: #{transformer_forward.1} parent=1 // pred_fallthru
      _
    // Predicated region
    $region18: #{transformer_forward.1} parent=1 // pred_check
      _
    $region19: #{transformer_forward.1} parent=1 // pred_check_branch
      %40 = sbr.rel (0) target = $region21
    $region20: #{transformer_forward.1} parent=1 // pred_region
      %41 = dma.done [#allocation5], 4992
    $region21: #{transformer_forward.1} parent=1 // pred_fallthru
      _
    %v42 = vld [vmem:[%s0] sm:$0xff]
    %v43 = vld [vmem:[%s0 + $0x8] sm:$0xff]
    %v44 = vld [vmem:[#allocation4] sm:$0xff]
    %v45 = vld [vmem:[#allocation4 + $0x8] sm:$0xff]
    %v46 = vld [vmem:[#allocation4 + $0x10] sm:$0xff]
    %v47 = vld [vmem:[#allocation4 + $0x18] sm:$0xff]
    %v48 = vld [vmem:[#allocation4 + $0x20] sm:$0xff]
    %v49 = vld [vmem:[#allocation4 + $0x28] sm:$0xff]
    %vm50 = vcmask 261120
    %v52 = vsel %vm50, %v42, 0
    %v55 = vsel %vm50, %v43, 0
    %57 = vmatprep.subr.mxu0 0.0
    %58 = vmatpush1.msra.mxu0 0.0
    %59 = vmatprep.subr.mxu0 0.0
    %60 = vmatpush1.msra.mxu0 0.0
    %61 = vmatprep.subr.mxu0 0.0
    %62 = vmatpush1.msra.mxu0 0.0
    %63 = vmatprep.subr.mxu0 0.0
    %64 = vmatpush1.msra.mxu0 0.0
    %65 = vmatprep.subr.mxu0 0.0
    %66 = vmatpush1.msra.mxu0 0.0
    %67 = vmatprep.subr.mxu0 0.0
    %68 = vmatpush1.msra.mxu0 0.0
    %69 = vmatprep.subr.mxu0 0.0
    %70 = vmatpush1.msra.mxu0 0.0
    %71 = vmatprep.subr.mxu0 0.0
    %72 = vmatpush1.msra.mxu0 0.0
    %73 = vmatprep.subr.mxu0 0.0
    %74 = vmatpush1.msra.mxu0 0.0
    %75 = vmatprep.subr.mxu0 0.0
    %76 = vmatpush1.msra.mxu0 0.0
    %77 = vmatprep.subr.mxu0 0.0
    %78 = vmatpush1.msra.mxu0 0.0
    %79 = vmatprep.subr.mxu0 0.0
    %80 = vmatpush1.msra.mxu0 0.0
    %81 = vmatprep.subr.mxu0 0.0
    %82 = vmatpush1.msra.mxu0 %v47
    %83 = vmatprep.subr.mxu0 0.0
    %84 = vmatpush1.msra.mxu0 %v46
    %85 = vmatprep.subr.mxu0 0.0
    %86 = vmatpush1.msra.mxu0 %v45
    %87 = vmatprep.subr.mxu0 0.0
    %88 = vmatpush1.msra.mxu0 %v44
    %89 = vmatprep.subr.mxu0 0.0
    %90 = vmatpush2.msra.mxu0 0.0
    %91 = vmatprep.subr.mxu0 0.0
    %92 = vmatpush2.msra.mxu0 0.0
    %93 = vmatprep.subr.mxu0 0.0
    %94 = vmatpush2.msra.mxu0 0.0
    %95 = vmatprep.subr.mxu0 0.0
    %96 = vmatpush2.msra.mxu0 0.0
    %97 = vmatprep.subr.mxu0 0.0
    %98 = vmatpush2.msra.mxu0 0.0
    %99 = vmatprep.subr.mxu0 0.0
    %100 = vmatpush2.msra.mxu0 0.0
    %101 = vmatprep.subr.mxu0 0.0
    %102 = vmatpush2.msra.mxu0 0.0
    %103 = vmatprep.subr.mxu0 0.0
    %104 = vmatpush2.msra.mxu0 0.0
    %105 = vmatprep.subr.mxu0 0.0
    %106 = vmatpush2.msra.mxu0 0.0
    %107 = vmatprep.subr.mxu0 0.0
    %108 = vmatpush2.msra.mxu0 0.0
    %109 = vmatprep.subr.mxu0 0.0
    %110 = vmatpush2.msra.mxu0 0.0
    %111 = vmatprep.subr.mxu0 0.0
    %112 = vmatpush2.msra.mxu0 0.0
    %113 = vmatprep.subr.mxu0 0.0
    %114 = vmatpush2.msra.mxu0 0.0
    %115 = vmatprep.subr.mxu0 0.0
    %116 = vmatpush2.msra.mxu0 0.0
    %117 = vmatprep.subr.mxu0 0.0
    %118 = vmatpush2.msra.mxu0 0.0
    %119 = vmatprep.subr.mxu0 0.0
    %120 = vmatpush2.msra.mxu0 0.0
    %121 = vmatprep.mubr.f32.mxu0 0.0
    %122 = vmatmul.mubr.f32.gmra.mxu0 %v52
    %v123 = vpop.f32.mrf.mxu0
    %v124 = vadd.f32 %v48, %v123
    %v125 = vpop.f32.mrf.mxu0
    %126 = vmatprep.mubr.f32.mxu0 0.0
    %127 = vmatmul.mubr.f32.gmra.mxu0 %v55
    %v128 = vpop.f32.mrf.mxu0
    %v129 = vadd.f32 %v49, %v128
    %v130 = vpop.f32.mrf.mxu0
    %131 = vdwg.mxu0
    %v132 = vld [vmem:[#allocation4 + $0x30] sm:$0xff]
    %v133 = vld [vmem:[#allocation4 + $0x38] sm:$0xff]
    %v134 = vld [vmem:[#allocation2] sm:$0xff]
    %v135 = vld [vmem:[#allocation2 + $0x8] sm:$0xff]
    %v136 = vld [vmem:[#allocation2 + $0x10] sm:$0xff]
    %v137 = vld [vmem:[#allocation2 + $0x18] sm:$0xff]
    %v138 = vld [vmem:[#allocation2 + $0x20] sm:$0xff]
    %v139 = vld [vmem:[#allocation2 + $0x28] sm:$0xff]
    %v140 = vld [vmem:[#allocation2 + $0x30] sm:$0xff]
    %v141 = vld [vmem:[#allocation2 + $0x38] sm:$0xff]
    %v142 = vld [vmem:[#allocation2 + $0x40] sm:$0xff]
    %v143 = vld [vmem:[#allocation2 + $0x48] sm:$0xff]
    %v144 = vld [vmem:[#allocation2 + $0x50] sm:$0xff]
    %v145 = vld [vmem:[#allocation2 + $0x58] sm:$0xff]
    %v146 = vld [vmem:[#allocation2 + $0x60] sm:$0xff]
    %v147 = vld [vmem:[#allocation2 + $0x68] sm:$0xff]
    %v148 = vld [vmem:[#allocation2 + $0x70] sm:$0xff]
    %v149 = vld [vmem:[#allocation2 + $0x78] sm:$0xff]
    %v150 = vld [vmem:[#allocation2 + $0x80] sm:$0xff]
    %v151 = vld [vmem:[#allocation2 + $0x88] sm:$0xff]
    %v152 = vld [vmem:[#allocation2 + $0x90] sm:$0xff]
    %v153 = vld [vmem:[#allocation2 + $0x98] sm:$0xff]
    %v154 = vld [vmem:[#allocation2 + $0xa0] sm:$0xff]
    %v155 = vld [vmem:[#allocation2 + $0xa8] sm:$0xff]
    %v156 = vld [vmem:[#allocation2 + $0xb0] sm:$0xff]
    %v157 = vld [vmem:[#allocation2 + $0xb8] sm:$0xff]
    %s158 = scalar_lea.vmem [#allocation2], 192
    %v159 = vld [vmem:[%s158] ss:$8 sm:$0xf]
    %v160 = vld [vmem:[%s158] ss:$8 sm:$0x30]
    %v161 = vor.u32 %v159, %v160
    %v163 = vlaneseq
    %v164 = vshrl.u32 %v163, 7
    %v165 = vsub.s32 0, %v164
    %v166 = vrot.slane %v161, %v165
    %v167 = vlaneseq
    %v168 = vshrl.u32 %v167, 7
    %v169 = vsub.s32 1, %v168
    %v170 = vrot.slane %v161, %v169
    %v171 = vlaneseq
    %v172 = vshrl.u32 %v171, 7
    %v173 = vsub.s32 2, %v172
    %v174 = vrot.slane %v161, %v173
    %v175 = vlaneseq
    %v176 = vshrl.u32 %v175, 7
    %v177 = vsub.s32 3, %v176
    %v178 = vrot.slane %v161, %v177
    %v179 = vlaneseq
    %v180 = vshrl.u32 %v179, 7
    %v181 = vsub.s32 4, %v180
    %v182 = vrot.slane %v161, %v181
    %v183 = vlaneseq
    %v184 = vshrl.u32 %v183, 7
    %v185 = vsub.s32 5, %v184
    %v186 = vrot.slane %v161, %v185
    %v194 = vsel %vm50, %v124, 0
    %v197 = vsel %vm50, %v129, 0
    %199 = vmatprep.subr.mxu0 0.0
    %200 = vmatpush1.msra.mxu0 0.0
    %201 = vmatprep.subr.mxu0 0.0
    %202 = vmatpush1.msra.mxu0 0.0
    %203 = vmatprep.subr.mxu0 0.0
    %204 = vmatpush1.msra.mxu0 0.0
    %205 = vmatprep.subr.mxu0 0.0
    %206 = vmatpush1.msra.mxu0 0.0
    %207 = vmatprep.subr.mxu0 0.0
    %208 = vmatpush1.msra.mxu0 0.0
    %209 = vmatprep.subr.mxu0 0.0
    %210 = vmatpush1.msra.mxu0 0.0
    %211 = vmatprep.subr.mxu0 0.0
    %212 = vmatpush1.msra.mxu0 0.0
    %213 = vmatprep.subr.mxu0 0.0
    %214 = vmatpush1.msra.mxu0 0.0
    %215 = vmatprep.subr.mxu0 0.0
    %216 = vmatpush1.msra.mxu0 0.0
    %217 = vmatprep.subr.mxu0 0.0
    %218 = vmatpush1.msra.mxu0 0.0
    %219 = vmatprep.subr.mxu0 0.0
    %220 = vmatpush1.msra.mxu0 0.0
    %221 = vmatprep.subr.mxu0 0.0
    %222 = vmatpush1.msra.mxu0 0.0
    %223 = vmatprep.subr.mxu0 %v153
    %224 = vmatpush1.msra.mxu0 %v152
    %225 = vmatprep.subr.mxu0 %v147
    %226 = vmatpush1.msra.mxu0 %v146
    %227 = vmatprep.subr.mxu0 %v141
    %228 = vmatpush1.msra.mxu0 %v140
    %229 = vmatprep.subr.mxu0 %v135
    %230 = vmatpush1.msra.mxu0 %v134
    %231 = vmatprep.subr.mxu0 0.0
    %232 = vmatpush2.msra.mxu0 0.0
    %233 = vmatprep.subr.mxu0 0.0
    %234 = vmatpush2.msra.mxu0 0.0
    %235 = vmatprep.subr.mxu0 0.0
    %236 = vmatpush2.msra.mxu0 0.0
    %237 = vmatprep.subr.mxu0 0.0
    %238 = vmatpush2.msra.mxu0 0.0
    %239 = vmatprep.subr.mxu0 0.0
    %240 = vmatpush2.msra.mxu0 0.0
    %241 = vmatprep.subr.mxu0 0.0
    %242 = vmatpush2.msra.mxu0 0.0
    %243 = vmatprep.subr.mxu0 0.0
    %244 = vmatpush2.msra.mxu0 0.0
    %245 = vmatprep.subr.mxu0 0.0
    %246 = vmatpush2.msra.mxu0 0.0
    %247 = vmatprep.subr.mxu0 0.0
    %248 = vmatpush2.msra.mxu0 0.0
    %249 = vmatprep.subr.mxu0 0.0
    %250 = vmatpush2.msra.mxu0 0.0
    %251 = vmatprep.subr.mxu0 0.0
    %252 = vmatpush2.msra.mxu0 0.0
    %253 = vmatprep.subr.mxu0 0.0
    %254 = vmatpush2.msra.mxu0 0.0
    %255 = vmatprep.subr.mxu0 0.0
    %256 = vmatpush2.msra.mxu0 0.0
    %257 = vmatprep.subr.mxu0 0.0
    %258 = vmatpush2.msra.mxu0 0.0
    %259 = vmatprep.subr.mxu0 0.0
    %260 = vmatpush2.msra.mxu0 0.0
    %261 = vmatprep.subr.mxu0 0.0
    %262 = vmatpush2.msra.mxu0 0.0
    %263 = vmatprep.mubr.f32.mxu0 0.0
    %264 = vmatmul.mubr.f32.gmra.mxu0 %v194
    %v265 = vpop.f32.mrf.mxu0
    %v266 = vadd.f32 %v166, %v265
    %v267 = vpop.f32.mrf.mxu0
    %v268 = vadd.f32 %v170, %v267
    %269 = vmatprep.mubr.f32.mxu0 0.0
    %270 = vmatmul.mubr.f32.gmra.mxu0 %v197
    %v271 = vpop.f32.mrf.mxu0
    %v272 = vadd.f32 %v166, %v271
    %v273 = vpop.f32.mrf.mxu0
    %v274 = vadd.f32 %v170, %v273
    %275 = vdwg.mxu0
    %276 = vmatprep.subr.mxu0 0.0
    %277 = vmatpush1.msra.mxu0 0.0
    %278 = vmatprep.subr.mxu0 0.0
    %279 = vmatpush1.msra.mxu0 0.0
    %280 = vmatprep.subr.mxu0 0.0
    %281 = vmatpush1.msra.mxu0 0.0
    %282 = vmatprep.subr.mxu0 0.0
    %283 = vmatpush1.msra.mxu0 0.0
    %284 = vmatprep.subr.mxu0 0.0
    %285 = vmatpush1.msra.mxu0 0.0
    %286 = vmatprep.subr.mxu0 0.0
    %287 = vmatpush1.msra.mxu0 0.0
    %288 = vmatprep.subr.mxu0 0.0
    %289 = vmatpush1.msra.mxu0 0.0
    %290 = vmatprep.subr.mxu0 0.0
    %291 = vmatpush1.msra.mxu0 0.0
    %292 = vmatprep.subr.mxu0 0.0
    %293 = vmatpush1.msra.mxu0 0.0
    %294 = vmatprep.subr.mxu0 0.0
    %295 = vmatpush1.msra.mxu0 0.0
    %296 = vmatprep.subr.mxu0 0.0
    %297 = vmatpush1.msra.mxu0 0.0
    %298 = vmatprep.subr.mxu0 0.0
    %299 = vmatpush1.msra.mxu0 0.0
    %300 = vmatprep.subr.mxu0 %v155
    %301 = vmatpush1.msra.mxu0 %v154
    %302 = vmatprep.subr.mxu0 %v149
    %303 = vmatpush1.msra.mxu0 %v148
    %304 = vmatprep.subr.mxu0 %v143
    %305 = vmatpush1.msra.mxu0 %v142
    %306 = vmatprep.subr.mxu0 %v137
    %307 = vmatpush1.msra.mxu0 %v136
    %308 = vmatprep.subr.mxu0 0.0
    %309 = vmatpush2.msra.mxu0 0.0
    %310 = vmatprep.subr.mxu0 0.0
    %311 = vmatpush2.msra.mxu0 0.0
    %312 = vmatprep.subr.mxu0 0.0
    %313 = vmatpush2.msra.mxu0 0.0
    %314 = vmatprep.subr.mxu0 0.0
    %315 = vmatpush2.msra.mxu0 0.0
    %316 = vmatprep.subr.mxu0 0.0
    %317 = vmatpush2.msra.mxu0 0.0
    %318 = vmatprep.subr.mxu0 0.0
    %319 = vmatpush2.msra.mxu0 0.0
    %320 = vmatprep.subr.mxu0 0.0
    %321 = vmatpush2.msra.mxu0 0.0
    %322 = vmatprep.subr.mxu0 0.0
    %323 = vmatpush2.msra.mxu0 0.0
    %324 = vmatprep.subr.mxu0 0.0
    %325 = vmatpush2.msra.mxu0 0.0
    %326 = vmatprep.subr.mxu0 0.0
    %327 = vmatpush2.msra.mxu0 0.0
    %328 = vmatprep.subr.mxu0 0.0
    %329 = vmatpush2.msra.mxu0 0.0
    %330 = vmatprep.subr.mxu0 0.0
    %331 = vmatpush2.msra.mxu0 0.0
    %332 = vmatprep.subr.mxu0 0.0
    %333 = vmatpush2.msra.mxu0 0.0
    %334 = vmatprep.subr.mxu0 0.0
    %335 = vmatpush2.msra.mxu0 0.0
    %336 = vmatprep.subr.mxu0 0.0
    %337 = vmatpush2.msra.mxu0 0.0
    %338 = vmatprep.subr.mxu0 0.0
    %339 = vmatpush2.msra.mxu0 0.0
    %340 = vmatprep.mubr.f32.mxu0 0.0
    %341 = vmatmul.mubr.f32.gmra.mxu0 %v194
    %v342 = vpop.f32.mrf.mxu0
    %v343 = vadd.f32 %v174, %v342
    %v344 = vpop.f32.mrf.mxu0
    %v345 = vadd.f32 %v178, %v344
    %346 = vmatprep.mubr.f32.mxu0 0.0
    %347 = vmatmul.mubr.f32.gmra.mxu0 %v197
    %v348 = vpop.f32.mrf.mxu0
    %v349 = vadd.f32 %v174, %v348
    %v350 = vpop.f32.mrf.mxu0
    %v351 = vadd.f32 %v178, %v350
    %352 = vdwg.mxu0
    %353 = vmatprep.subr.mxu0 0.0
    %354 = vmatpush1.msra.mxu0 0.0
    %355 = vmatprep.subr.mxu0 0.0
    %356 = vmatpush1.msra.mxu0 0.0
    %357 = vmatprep.subr.mxu0 0.0
    %358 = vmatpush1.msra.mxu0 0.0
    %359 = vmatprep.subr.mxu0 0.0
    %360 = vmatpush1.msra.mxu0 0.0
    %361 = vmatprep.subr.mxu0 0.0
    %362 = vmatpush1.msra.mxu0 0.0
    %363 = vmatprep.subr.mxu0 0.0
    %364 = vmatpush1.msra.mxu0 0.0
    %365 = vmatprep.subr.mxu0 0.0
    %366 = vmatpush1.msra.mxu0 0.0
    %367 = vmatprep.subr.mxu0 0.0
    %368 = vmatpush1.msra.mxu0 0.0
    %369 = vmatprep.subr.mxu0 0.0
    %370 = vmatpush1.msra.mxu0 0.0
    %371 = vmatprep.subr.mxu0 0.0
    %372 = vmatpush1.msra.mxu0 0.0
    %373 = vmatprep.subr.mxu0 0.0
    %374 = vmatpush1.msra.mxu0 0.0
    %375 = vmatprep.subr.mxu0 0.0
    %376 = vmatpush1.msra.mxu0 0.0
    %377 = vmatprep.subr.mxu0 %v157
    %378 = vmatpush1.msra.mxu0 %v156
    %379 = vmatprep.subr.mxu0 %v151
    %380 = vmatpush1.msra.mxu0 %v150
    %381 = vmatprep.subr.mxu0 %v145
    %382 = vmatpush1.msra.mxu0 %v144
    %383 = vmatprep.subr.mxu0 %v139
    %384 = vmatpush1.msra.mxu0 %v138
    %385 = vmatprep.subr.mxu0 0.0
    %386 = vmatpush2.msra.mxu0 0.0
    %387 = vmatprep.subr.mxu0 0.0
    %388 = vmatpush2.msra.mxu0 0.0
    %389 = vmatprep.subr.mxu0 0.0
    %390 = vmatpush2.msra.mxu0 0.0
    %391 = vmatprep.subr.mxu0 0.0
    %392 = vmatpush2.msra.mxu0 0.0
    %393 = vmatprep.subr.mxu0 0.0
    %394 = vmatpush2.msra.mxu0 0.0
    %395 = vmatprep.subr.mxu0 0.0
    %396 = vmatpush2.msra.mxu0 0.0
    %397 = vmatprep.subr.mxu0 0.0
    %398 = vmatpush2.msra.mxu0 0.0
    %399 = vmatprep.subr.mxu0 0.0
    %400 = vmatpush2.msra.mxu0 0.0
    %401 = vmatprep.subr.mxu0 0.0
    %402 = vmatpush2.msra.mxu0 0.0
    %403 = vmatprep.subr.mxu0 0.0
    %404 = vmatpush2.msra.mxu0 0.0
    %405 = vmatprep.subr.mxu0 0.0
    %406 = vmatpush2.msra.mxu0 0.0
    %407 = vmatprep.subr.mxu0 0.0
    %408 = vmatpush2.msra.mxu0 0.0
    %409 = vmatprep.subr.mxu0 0.0
    %410 = vmatpush2.msra.mxu0 0.0
    %411 = vmatprep.subr.mxu0 0.0
    %412 = vmatpush2.msra.mxu0 0.0
    %413 = vmatprep.subr.mxu0 0.0
    %414 = vmatpush2.msra.mxu0 0.0
    %415 = vmatprep.subr.mxu0 0.0
    %416 = vmatpush2.msra.mxu0 0.0
    %417 = vmatprep.mubr.f32.mxu0 0.0
    %418 = vmatmul.mubr.f32.gmra.mxu0 %v194
    %v419 = vpop.f32.mrf.mxu0
    %v420 = vadd.f32 %v182, %v419
    %v421 = vpop.f32.mrf.mxu0
    %v422 = vadd.f32 %v186, %v421
    %423 = vmatprep.mubr.f32.mxu0 0.0
    %424 = vmatmul.mubr.f32.gmra.mxu0 %v197
    %v425 = vpop.f32.mrf.mxu0
    %v426 = vadd.f32 %v182, %v425
    %v427 = vpop.f32.mrf.mxu0
    %v428 = vadd.f32 %v186, %v427
    %429 = vdwg.mxu0
    %430 = vmatprep.subr.mxu0 0.0
    %431 = vmatpush1.xpose.msra.mxu0 0.0
    %432 = vmatprep.subr.mxu0 0.0
    %433 = vmatpush1.xpose.msra.mxu0 0.0
    %434 = vmatprep.subr.mxu0 0.0
    %435 = vmatpush1.xpose.msra.mxu0 0.0
    %436 = vmatprep.subr.mxu0 0.0
    %437 = vmatpush1.xpose.msra.mxu0 0.0
    %438 = vmatprep.subr.mxu0 0.0
    %439 = vmatpush1.xpose.msra.mxu0 0.0
    %440 = vmatprep.subr.mxu0 0.0
    %441 = vmatpush1.xpose.msra.mxu0 0.0
    %442 = vmatprep.subr.mxu0 0.0
    %443 = vmatpush1.xpose.msra.mxu0 0.0
    %444 = vmatprep.subr.mxu0 0.0
    %445 = vmatpush1.xpose.msra.mxu0 0.0
    %446 = vmatprep.subr.mxu0 0.0
    %447 = vmatpush1.xpose.msra.mxu0 0.0
    %448 = vmatprep.subr.mxu0 0.0
    %449 = vmatpush1.xpose.msra.mxu0 0.0
    %450 = vmatprep.subr.mxu0 0.0
    %451 = vmatpush1.xpose.msra.mxu0 0.0
    %452 = vmatprep.subr.mxu0 0.0
    %453 = vmatpush1.xpose.msra.mxu0 0.0
    %454 = vmatprep.subr.mxu0 0.0
    %455 = vmatpush1.xpose.msra.mxu0 0.0
    %456 = vmatprep.subr.mxu0 0.0
    %457 = vmatpush1.xpose.msra.mxu0 0.0
    %458 = vmatprep.subr.mxu0 0.0
    %459 = vmatpush1.xpose.msra.mxu0 %v349
    %460 = vmatprep.subr.mxu0 0.0
    %461 = vmatpush1.xpose.msra.mxu0 %v343
    %462 = vmatprep.subr.mxu0 0.0
    %463 = vmatpush2.xpose.msra.mxu0 0.0
    %464 = vmatprep.subr.mxu0 0.0
    %465 = vmatpush2.xpose.msra.mxu0 0.0
    %466 = vmatprep.subr.mxu0 0.0
    %467 = vmatpush2.xpose.msra.mxu0 0.0
    %468 = vmatprep.subr.mxu0 0.0
    %469 = vmatpush2.xpose.msra.mxu0 0.0
    %470 = vmatprep.subr.mxu0 0.0
    %471 = vmatpush2.xpose.msra.mxu0 0.0
    %472 = vmatprep.subr.mxu0 0.0
    %473 = vmatpush2.xpose.msra.mxu0 0.0
    %474 = vmatprep.subr.mxu0 0.0
    %475 = vmatpush2.xpose.msra.mxu0 0.0
    %476 = vmatprep.subr.mxu0 0.0
    %477 = vmatpush2.xpose.msra.mxu0 0.0
    %478 = vmatprep.subr.mxu0 0.0
    %479 = vmatpush2.xpose.msra.mxu0 0.0
    %480 = vmatprep.subr.mxu0 0.0
    %481 = vmatpush2.xpose.msra.mxu0 0.0
    %482 = vmatprep.subr.mxu0 0.0
    %483 = vmatpush2.xpose.msra.mxu0 0.0
    %484 = vmatprep.subr.mxu0 0.0
    %485 = vmatpush2.xpose.msra.mxu0 0.0
    %486 = vmatprep.subr.mxu0 0.0
    %487 = vmatpush2.xpose.msra.mxu0 0.0
    %488 = vmatprep.subr.mxu0 0.0
    %489 = vmatpush2.xpose.msra.mxu0 0.0
    %490 = vmatprep.subr.mxu0 0.0
    %491 = vmatpush2.xpose.msra.mxu0 0.0
    %492 = vmatprep.subr.mxu0 0.0
    %493 = vmatpush2.xpose.msra.mxu0 0.0
    %494 = vmatprep.mubr.f32.mxu0 0.0
    %495 = vmatmul.mubr.f32.gmra.mxu0 %v266
    %v496 = vpop.f32.mrf.mxu0
    %v497 = vadd.f32 0.0, %v496
    %v498 = vpop.f32.mrf.mxu0
    %499 = vmatprep.mubr.f32.mxu0 0.0
    %500 = vmatmul.mubr.f32.gmra.mxu0 %v272
    %v501 = vpop.f32.mrf.mxu0
    %v502 = vadd.f32 0.0, %v501
    %v503 = vpop.f32.mrf.mxu0
    %504 = vdwg.mxu0
    %v505 = vmul.f32 %v497, 0.25
    %v506 = vmul.f32 %v502, 0.25
    %v507 = vadd.f32 %v505, %v132
    %v508 = vadd.f32 %v506, %v133
    %vm509 = vcmask 130048
    %v510 = vsel %vm509, %v507, -inf
    %511 = vmax.xlane.f32.xlu0 %v510
    %v512 = vpop.xlane.xlu0 %511
    %v513 = vsel %vm509, %v508, -inf
    %514 = vmax.xlane.f32.xlu0 %v513
    %v515 = vpop.xlane.xlu0 %514
    %v516 = vsub.f32 %v507, %v512
    %v517 = vsub.f32 %v508, %v515
    %v518 = vmul.f32 %v516, 1.442695
    %v519 = vpow.pop %v518
    %v520 = vmul.f32 %v517, 1.442695
    %v521 = vpow.pop %v520
    %v522 = vsel %vm509, %v519, 0.0
    %523 = vadd.xlane.f32.xlu0 %v522
    %v524 = vpop.xlane.xlu0 %523
    %v525 = vsel %vm509, %v521, 0.0
    %526 = vadd.xlane.f32.xlu0 %v525
    %v527 = vpop.xlane.xlu0 %526
    %v528 = vrcp.pop %v524
    %v529 = vrcp.pop %v527
    %v530 = vmul.f32 %v519, %v528
    %v531 = vmul.f32 %v521, %v529
    %532 = vmatprep.subr.mxu0 0.0
    %533 = vmatpush1.xpose.msra.mxu0 0.0
    %534 = vmatprep.subr.mxu0 0.0
    %535 = vmatpush1.xpose.msra.mxu0 0.0
    %536 = vmatprep.subr.mxu0 0.0
    %537 = vmatpush1.xpose.msra.mxu0 0.0
    %538 = vmatprep.subr.mxu0 0.0
    %539 = vmatpush1.xpose.msra.mxu0 0.0
    %540 = vmatprep.subr.mxu0 0.0
    %541 = vmatpush1.xpose.msra.mxu0 0.0
    %542 = vmatprep.subr.mxu0 0.0
    %543 = vmatpush1.xpose.msra.mxu0 0.0
    %544 = vmatprep.subr.mxu0 0.0
    %545 = vmatpush1.xpose.msra.mxu0 0.0
    %546 = vmatprep.subr.mxu0 0.0
    %547 = vmatpush1.xpose.msra.mxu0 0.0
    %548 = vmatprep.subr.mxu0 0.0
    %549 = vmatpush1.xpose.msra.mxu0 0.0
    %550 = vmatprep.subr.mxu0 0.0
    %551 = vmatpush1.xpose.msra.mxu0 0.0
    %552 = vmatprep.subr.mxu0 0.0
    %553 = vmatpush1.xpose.msra.mxu0 0.0
    %554 = vmatprep.subr.mxu0 0.0
    %555 = vmatpush1.xpose.msra.mxu0 0.0
    %556 = vmatprep.subr.mxu0 0.0
    %557 = vmatpush1.xpose.msra.mxu0 0.0
    %558 = vmatprep.subr.mxu0 0.0
    %559 = vmatpush1.xpose.msra.mxu0 0.0
    %560 = vmatprep.subr.mxu0 0.0
    %561 = vmatpush1.xpose.msra.mxu0 %v351
    %562 = vmatprep.subr.mxu0 0.0
    %563 = vmatpush1.xpose.msra.mxu0 %v345
    %564 = vmatprep.subr.mxu0 0.0
    %565 = vmatpush2.xpose.msra.mxu0 0.0
    %566 = vmatprep.subr.mxu0 0.0
    %567 = vmatpush2.xpose.msra.mxu0 0.0
    %568 = vmatprep.subr.mxu0 0.0
    %569 = vmatpush2.xpose.msra.mxu0 0.0
    %570 = vmatprep.subr.mxu0 0.0
    %571 = vmatpush2.xpose.msra.mxu0 0.0
    %572 = vmatprep.subr.mxu0 0.0
    %573 = vmatpush2.xpose.msra.mxu0 0.0
    %574 = vmatprep.subr.mxu0 0.0
    %575 = vmatpush2.xpose.msra.mxu0 0.0
    %576 = vmatprep.subr.mxu0 0.0
    %577 = vmatpush2.xpose.msra.mxu0 0.0
    %578 = vmatprep.subr.mxu0 0.0
    %579 = vmatpush2.xpose.msra.mxu0 0.0
    %580 = vmatprep.subr.mxu0 0.0
    %581 = vmatpush2.xpose.msra.mxu0 0.0
    %582 = vmatprep.subr.mxu0 0.0
    %583 = vmatpush2.xpose.msra.mxu0 0.0
    %584 = vmatprep.subr.mxu0 0.0
    %585 = vmatpush2.xpose.msra.mxu0 0.0
    %586 = vmatprep.subr.mxu0 0.0
    %587 = vmatpush2.xpose.msra.mxu0 0.0
    %588 = vmatprep.subr.mxu0 0.0
    %589 = vmatpush2.xpose.msra.mxu0 0.0
    %590 = vmatprep.subr.mxu0 0.0
    %591 = vmatpush2.xpose.msra.mxu0 0.0
    %592 = vmatprep.subr.mxu0 0.0
    %593 = vmatpush2.xpose.msra.mxu0 0.0
    %594 = vmatprep.subr.mxu0 0.0
    %595 = vmatpush2.xpose.msra.mxu0 0.0
    %596 = vmatprep.mubr.f32.mxu0 0.0
    %597 = vmatmul.mubr.f32.gmra.mxu0 %v268
    %v598 = vpop.f32.mrf.mxu0
    %v599 = vadd.f32 0.0, %v598
    %v600 = vpop.f32.mrf.mxu0
    %601 = vmatprep.mubr.f32.mxu0 0.0
    %602 = vmatmul.mubr.f32.gmra.mxu0 %v274
    %v603 = vpop.f32.mrf.mxu0
    %v604 = vadd.f32 0.0, %v603
    %v605 = vpop.f32.mrf.mxu0
    %606 = vdwg.mxu0
    %v607 = vmul.f32 %v599, 0.25
    %v608 = vmul.f32 %v604, 0.25
    %v609 = vadd.f32 %v607, %v132
    %v610 = vadd.f32 %v608, %v133
    %v611 = vsel %vm509, %v609, -inf
    %612 = vmax.xlane.f32.xlu0 %v611
    %v613 = vpop.xlane.xlu0 %612
    %v614 = vsel %vm509, %v610, -inf
    %615 = vmax.xlane.f32.xlu0 %v614
    %v616 = vpop.xlane.xlu0 %615
    %v617 = vsub.f32 %v609, %v613
    %v618 = vsub.f32 %v610, %v616
    %v619 = vmul.f32 %v617, 1.442695
    %v620 = vpow.pop %v619
    %v621 = vmul.f32 %v618, 1.442695
    %v622 = vpow.pop %v621
    %v623 = vsel %vm509, %v620, 0.0
    %624 = vadd.xlane.f32.xlu0 %v623
    %v625 = vpop.xlane.xlu0 %624
    %v626 = vsel %vm509, %v622, 0.0
    %627 = vadd.xlane.f32.xlu0 %v626
    %v628 = vpop.xlane.xlu0 %627
    %v629 = vrcp.pop %v625
    %v630 = vrcp.pop %v628
    %v631 = vmul.f32 %v620, %v629
    %v632 = vmul.f32 %v622, %v630
    %v634 = vsel %vm509, %v631, 0
    %v637 = vsel %vm509, %v632, 0
    %639 = vmatprep.subr.mxu0 0.0
    %640 = vmatpush1.msra.mxu0 0.0
    %641 = vmatprep.subr.mxu0 0.0
    %642 = vmatpush1.msra.mxu0 0.0
    %643 = vmatprep.subr.mxu0 0.0
    %644 = vmatpush1.msra.mxu0 0.0
    %645 = vmatprep.subr.mxu0 0.0
    %646 = vmatpush1.msra.mxu0 0.0
    %647 = vmatprep.subr.mxu0 0.0
    %648 = vmatpush1.msra.mxu0 0.0
    %649 = vmatprep.subr.mxu0 0.0
    %650 = vmatpush1.msra.mxu0 0.0
    %651 = vmatprep.subr.mxu0 0.0
    %652 = vmatpush1.msra.mxu0 0.0
    %653 = vmatprep.subr.mxu0 0.0
    %654 = vmatpush1.msra.mxu0 0.0
    %655 = vmatprep.subr.mxu0 0.0
    %656 = vmatpush1.msra.mxu0 0.0
    %657 = vmatprep.subr.mxu0 0.0
    %658 = vmatpush1.msra.mxu0 0.0
    %659 = vmatprep.subr.mxu0 0.0
    %660 = vmatpush1.msra.mxu0 0.0
    %661 = vmatprep.subr.mxu0 0.0
    %662 = vmatpush1.msra.mxu0 0.0
    %663 = vmatprep.subr.mxu0 0.0
    %664 = vmatpush1.msra.mxu0 0.0
    %665 = vmatprep.subr.mxu0 0.0
    %666 = vmatpush1.msra.mxu0 0.0
    %667 = vmatprep.subr.mxu0 0.0
    %668 = vmatpush1.msra.mxu0 %v428
    %669 = vmatprep.subr.mxu0 0.0
    %670 = vmatpush1.msra.mxu0 %v422
    %671 = vmatprep.subr.mxu0 0.0
    %672 = vmatpush2.msra.mxu0 0.0
    %673 = vmatprep.subr.mxu0 0.0
    %674 = vmatpush2.msra.mxu0 0.0
    %675 = vmatprep.subr.mxu0 0.0
    %676 = vmatpush2.msra.mxu0 0.0
    %677 = vmatprep.subr.mxu0 0.0
    %678 = vmatpush2.msra.mxu0 0.0
    %679 = vmatprep.subr.mxu0 0.0
    %680 = vmatpush2.msra.mxu0 0.0
    %681 = vmatprep.subr.mxu0 0.0
    %682 = vmatpush2.msra.mxu0 0.0
    %683 = vmatprep.subr.mxu0 0.0
    %684 = vmatpush2.msra.mxu0 0.0
    %685 = vmatprep.subr.mxu0 0.0
    %686 = vmatpush2.msra.mxu0 0.0
    %687 = vmatprep.subr.mxu0 0.0
    %688 = vmatpush2.msra.mxu0 0.0
    %689 = vmatprep.subr.mxu0 0.0
    %690 = vmatpush2.msra.mxu0 0.0
    %691 = vmatprep.subr.mxu0 0.0
    %692 = vmatpush2.msra.mxu0 0.0
    %693 = vmatprep.subr.mxu0 0.0
    %694 = vmatpush2.msra.mxu0 0.0
    %695 = vmatprep.subr.mxu0 0.0
    %696 = vmatpush2.msra.mxu0 0.0
    %697 = vmatprep.subr.mxu0 0.0
    %698 = vmatpush2.msra.mxu0 0.0
    %699 = vmatprep.subr.mxu0 0.0
    %700 = vmatpush2.msra.mxu0 0.0
    %701 = vmatprep.subr.mxu0 0.0
    %702 = vmatpush2.msra.mxu0 0.0
    %703 = vmatprep.mubr.f32.mxu0 0.0
    %704 = vmatmul.mubr.f32.gmra.mxu0 %v634
    %v705 = vpop.f32.mrf.mxu0
    %v706 = vadd.f32 0.0, %v705
    %v707 = vpop.f32.mrf.mxu0
    %708 = vmatprep.mubr.f32.mxu0 0.0
    %709 = vmatmul.mubr.f32.gmra.mxu0 %v637
    %v710 = vpop.f32.mrf.mxu0
    %v711 = vadd.f32 0.0, %v710
    %v712 = vpop.f32.mrf.mxu0
    %713 = vdwg.mxu0
    %v715 = vsel %vm509, %v530, 0
    %v718 = vsel %vm509, %v531, 0
    %720 = vmatprep.subr.mxu0 0.0
    %721 = vmatpush1.msra.mxu0 0.0
    %722 = vmatprep.subr.mxu0 0.0
    %723 = vmatpush1.msra.mxu0 0.0
    %724 = vmatprep.subr.mxu0 0.0
    %725 = vmatpush1.msra.mxu0 0.0
    %726 = vmatprep.subr.mxu0 0.0
    %727 = vmatpush1.msra.mxu0 0.0
    %728 = vmatprep.subr.mxu0 0.0
    %729 = vmatpush1.msra.mxu0 0.0
    %730 = vmatprep.subr.mxu0 0.0
    %731 = vmatpush1.msra.mxu0 0.0
    %732 = vmatprep.subr.mxu0 0.0
    %733 = vmatpush1.msra.mxu0 0.0
    %734 = vmatprep.subr.mxu0 0.0
    %735 = vmatpush1.msra.mxu0 0.0
    %736 = vmatprep.subr.mxu0 0.0
    %737 = vmatpush1.msra.mxu0 0.0
    %738 = vmatprep.subr.mxu0 0.0
    %739 = vmatpush1.msra.mxu0 0.0
    %740 = vmatprep.subr.mxu0 0.0
    %741 = vmatpush1.msra.mxu0 0.0
    %742 = vmatprep.subr.mxu0 0.0
    %743 = vmatpush1.msra.mxu0 0.0
    %744 = vmatprep.subr.mxu0 0.0
    %745 = vmatpush1.msra.mxu0 0.0
    %746 = vmatprep.subr.mxu0 0.0
    %747 = vmatpush1.msra.mxu0 0.0
    %748 = vmatprep.subr.mxu0 0.0
    %749 = vmatpush1.msra.mxu0 %v426
    %750 = vmatprep.subr.mxu0 0.0
    %751 = vmatpush1.msra.mxu0 %v420
    %752 = vmatprep.subr.mxu0 0.0
    %753 = vmatpush2.msra.mxu0 0.0
    %754 = vmatprep.subr.mxu0 0.0
    %755 = vmatpush2.msra.mxu0 0.0
    %756 = vmatprep.subr.mxu0 0.0
    %757 = vmatpush2.msra.mxu0 0.0
    %758 = vmatprep.subr.mxu0 0.0
    %759 = vmatpush2.msra.mxu0 0.0
    %760 = vmatprep.subr.mxu0 0.0
    %761 = vmatpush2.msra.mxu0 0.0
    %762 = vmatprep.subr.mxu0 0.0
    %763 = vmatpush2.msra.mxu0 0.0
    %764 = vmatprep.subr.mxu0 0.0
    %765 = vmatpush2.msra.mxu0 0.0
    %766 = vmatprep.subr.mxu0 0.0
    %767 = vmatpush2.msra.mxu0 0.0
    %768 = vmatprep.subr.mxu0 0.0
    %769 = vmatpush2.msra.mxu0 0.0
    %770 = vmatprep.subr.mxu0 0.0
    %771 = vmatpush2.msra.mxu0 0.0
    %772 = vmatprep.subr.mxu0 0.0
    %773 = vmatpush2.msra.mxu0 0.0
    %774 = vmatprep.subr.mxu0 0.0
    %775 = vmatpush2.msra.mxu0 0.0
    %776 = vmatprep.subr.mxu0 0.0
    %777 = vmatpush2.msra.mxu0 0.0
    %778 = vmatprep.subr.mxu0 0.0
    %779 = vmatpush2.msra.mxu0 0.0
    %780 = vmatprep.subr.mxu0 0.0
    %781 = vmatpush2.msra.mxu0 0.0
    %782 = vmatprep.subr.mxu0 0.0
    %783 = vmatpush2.msra.mxu0 0.0
    %784 = vmatprep.mubr.f32.mxu0 0.0
    %785 = vmatmul.mubr.f32.gmra.mxu0 %v715
    %v786 = vpop.f32.mrf.mxu0
    %v787 = vadd.f32 %v706, %v786
    %v788 = vpop.f32.mrf.mxu0
    %789 = vmatprep.mubr.f32.mxu0 0.0
    %790 = vmatmul.mubr.f32.gmra.mxu0 %v718
    %v791 = vpop.f32.mrf.mxu0
    %v792 = vadd.f32 %v711, %v791
    %v793 = vpop.f32.mrf.mxu0
    %794 = vdwg.mxu0
    %v795 = vld [vmem:[#allocation4 + $0xca] sm:$0x1]
    %v796 = vlaneseq
    %v797 = vshrl.u32 %v796, 7
    %v798 = vsub.s32 0, %v797
    %v799 = vrot.slane %v795, %v798
    %v800 = vadd.f32 %v787, %v799
    %v801 = vadd.f32 %v792, %v799
    %v802 = vadd.f32 %v124, %v800
    %v803 = vadd.f32 %v129, %v801
    %v804 = vld [vmem:[#allocation4 + $0xcb] sm:$0x1]
    %v805 = vld [vmem:[#allocation4 + $0xcc] sm:$0x1]
    %v806 = vsel %vm50, %v802, 0.0
    %807 = vadd.xlane.f32.xlu0 %v806
    %v808 = vpop.xlane.xlu0 %807
    %v809 = vsel %vm50, %v803, 0.0
    %810 = vadd.xlane.f32.xlu0 %v809
    %v811 = vpop.xlane.xlu0 %810
    %v812 = vrcp.pop 32.0
    %v813 = vmul.f32 %v808, %v812
    %v814 = vmul.f32 %v811, %v812
    %v815 = vsub.f32 %v802, %v813
    %v816 = vsub.f32 %v803, %v814
    %v817 = vmul.f32 %v815, %v815
    %v818 = vmul.f32 %v816, %v816
    %v819 = vsel %vm50, %v817, 0.0
    %820 = vadd.xlane.f32.xlu0 %v819
    %v821 = vpop.xlane.xlu0 %820
    %v822 = vsel %vm50, %v818, 0.0
    %823 = vadd.xlane.f32.xlu0 %v822
    %v824 = vpop.xlane.xlu0 %823
    %v825 = vmul.f32 %v821, %v812
    %v826 = vmul.f32 %v824, %v812
    %v827 = vadd.f32 %v825, 1e-05
    %v828 = vadd.f32 %v826, 1e-05
    %v829 = vrsqrt.pop %v827
    %v830 = vrsqrt.pop %v828
    %v831 = vmul.f32 %v815, %v829
    %v832 = vmul.f32 %v816, %v830
    %v833 = vlaneseq
    %v834 = vshrl.u32 %v833, 7
    %v835 = vsub.s32 0, %v834
    %v836 = vrot.slane %v804, %v835
    %v837 = vmul.f32 %v831, %v836
    %v838 = vmul.f32 %v832, %v836
    %v839 = vlaneseq
    %v840 = vshrl.u32 %v839, 7
    %v841 = vsub.s32 0, %v840
    %v842 = vrot.slane %v805, %v841
    %v843 = vadd.f32 %v837, %v842
    %v844 = vadd.f32 %v838, %v842
    %v845 = vld [vmem:[#allocation4 + $0x68] sm:$0xff]
    %v846 = vld [vmem:[#allocation4 + $0x70] sm:$0xff]
    %v847 = vld [vmem:[#allocation4 + $0x78] sm:$0xff]
    %v848 = vld [vmem:[#allocation4 + $0x80] sm:$0xff]
    %v849 = vld [vmem:[#allocation4 + $0xc8] sm:$0x1]
    %v850 = vlaneseq
    %v851 = vshrl.u32 %v850, 7
    %v852 = vsub.s32 0, %v851
    %v853 = vrot.slane %v849, %v852
    %v855 = vsel %vm50, %v843, 0
    %v858 = vsel %vm50, %v844, 0
    %860 = vmatprep.subr.mxu0 0.0
    %861 = vmatpush1.msra.mxu0 0.0
    %862 = vmatprep.subr.mxu0 0.0
    %863 = vmatpush1.msra.mxu0 0.0
    %864 = vmatprep.subr.mxu0 0.0
    %865 = vmatpush1.msra.mxu0 0.0
    %866 = vmatprep.subr.mxu0 0.0
    %867 = vmatpush1.msra.mxu0 0.0
    %868 = vmatprep.subr.mxu0 0.0
    %869 = vmatpush1.msra.mxu0 0.0
    %870 = vmatprep.subr.mxu0 0.0
    %871 = vmatpush1.msra.mxu0 0.0
    %872 = vmatprep.subr.mxu0 0.0
    %873 = vmatpush1.msra.mxu0 0.0
    %874 = vmatprep.subr.mxu0 0.0
    %875 = vmatpush1.msra.mxu0 0.0
    %876 = vmatprep.subr.mxu0 0.0
    %877 = vmatpush1.msra.mxu0 0.0
    %878 = vmatprep.subr.mxu0 0.0
    %879 = vmatpush1.msra.mxu0 0.0
    %880 = vmatprep.subr.mxu0 0.0
    %881 = vmatpush1.msra.mxu0 0.0
    %882 = vmatprep.subr.mxu0 0.0
    %883 = vmatpush1.msra.mxu0 0.0
    %884 = vmatprep.subr.mxu0 0.0
    %885 = vmatpush1.msra.mxu0 %v848
    %886 = vmatprep.subr.mxu0 0.0
    %887 = vmatpush1.msra.mxu0 %v847
    %888 = vmatprep.subr.mxu0 0.0
    %889 = vmatpush1.msra.mxu0 %v846
    %890 = vmatprep.subr.mxu0 0.0
    %891 = vmatpush1.msra.mxu0 %v845
    %892 = vmatprep.subr.mxu0 0.0
    %893 = vmatpush2.msra.mxu0 0.0
    %894 = vmatprep.subr.mxu0 0.0
    %895 = vmatpush2.msra.mxu0 0.0
    %896 = vmatprep.subr.mxu0 0.0
    %897 = vmatpush2.msra.mxu0 0.0
    %898 = vmatprep.subr.mxu0 0.0
    %899 = vmatpush2.msra.mxu0 0.0
    %900 = vmatprep.subr.mxu0 0.0
    %901 = vmatpush2.msra.mxu0 0.0
    %902 = vmatprep.subr.mxu0 0.0
    %903 = vmatpush2.msra.mxu0 0.0
    %904 = vmatprep.subr.mxu0 0.0
    %905 = vmatpush2.msra.mxu0 0.0
    %906 = vmatprep.subr.mxu0 0.0
    %907 = vmatpush2.msra.mxu0 0.0
    %908 = vmatprep.subr.mxu0 0.0
    %909 = vmatpush2.msra.mxu0 0.0
    %910 = vmatprep.subr.mxu0 0.0
    %911 = vmatpush2.msra.mxu0 0.0
    %912 = vmatprep.subr.mxu0 0.0
    %913 = vmatpush2.msra.mxu0 0.0
    %914 = vmatprep.subr.mxu0 0.0
    %915 = vmatpush2.msra.mxu0 0.0
    %916 = vmatprep.subr.mxu0 0.0
    %917 = vmatpush2.msra.mxu0 0.0
    %918 = vmatprep.subr.mxu0 0.0
    %919 = vmatpush2.msra.mxu0 0.0
    %920 = vmatprep.subr.mxu0 0.0
    %921 = vmatpush2.msra.mxu0 0.0
    %922 = vmatprep.subr.mxu0 0.0
    %923 = vmatpush2.msra.mxu0 0.0
    %924 = vmatprep.mubr.f32.mxu0 0.0
    %925 = vmatmul.mubr.f32.gmra.mxu0 %v855
    %v926 = vpop.f32.mrf.mxu0
    %v927 = vadd.f32 %v853, %v926
    %v928 = vpop.f32.mrf.mxu0
    %929 = vmatprep.mubr.f32.mxu0 0.0
    %930 = vmatmul.mubr.f32.gmra.mxu0 %v858
    %v931 = vpop.f32.mrf.mxu0
    %v932 = vadd.f32 %v853, %v931
    %v933 = vpop.f32.mrf.mxu0
    %934 = vdwg.mxu0
    %v935 = vmax.f32 %v927, 0.0
    %v936 = vmax.f32 %v932, 0.0
    %v937 = vld [vmem:[#allocation4 + $0x88] sm:$0xff]
    %v938 = vld [vmem:[#allocation4 + $0x90] sm:$0xff]
    %v939 = vld [vmem:[#allocation4 + $0x98] sm:$0xff]
    %v940 = vld [vmem:[#allocation4 + $0xa0] sm:$0xff]
    %v941 = vld [vmem:[#allocation4 + $0xa8] sm:$0xff]
    %v942 = vld [vmem:[#allocation4 + $0xb0] sm:$0xff]
    %v943 = vld [vmem:[#allocation4 + $0xb8] sm:$0xff]
    %v944 = vld [vmem:[#allocation4 + $0xc0] sm:$0xff]
    %v945 = vld [vmem:[#allocation4 + $0xc9] sm:$0x1]
    %v946 = vlaneseq
    %v947 = vshrl.u32 %v946, 7
    %v948 = vsub.s32 0, %v947
    %v949 = vrot.slane %v945, %v948
    %vm950 = vcmask 523264
    %v952 = vsel %vm950, %v935, 0
    %v955 = vsel %vm950, %v936, 0
    %957 = vmatprep.subr.mxu0 0.0
    %958 = vmatpush1.msra.mxu0 0.0
    %959 = vmatprep.subr.mxu0 0.0
    %960 = vmatpush1.msra.mxu0 0.0
    %961 = vmatprep.subr.mxu0 0.0
    %962 = vmatpush1.msra.mxu0 0.0
    %963 = vmatprep.subr.mxu0 0.0
    %964 = vmatpush1.msra.mxu0 0.0
    %965 = vmatprep.subr.mxu0 0.0
    %966 = vmatpush1.msra.mxu0 0.0
    %967 = vmatprep.subr.mxu0 0.0
    %968 = vmatpush1.msra.mxu0 0.0
    %969 = vmatprep.subr.mxu0 0.0
    %970 = vmatpush1.msra.mxu0 0.0
    %971 = vmatprep.subr.mxu0 0.0
    %972 = vmatpush1.msra.mxu0 0.0
    %973 = vmatprep.subr.mxu0 0.0
    %974 = vmatpush1.msra.mxu0 %v944
    %975 = vmatprep.subr.mxu0 0.0
    %976 = vmatpush1.msra.mxu0 %v943
    %977 = vmatprep.subr.mxu0 0.0
    %978 = vmatpush1.msra.mxu0 %v942
    %979 = vmatprep.subr.mxu0 0.0
    %980 = vmatpush1.msra.mxu0 %v941
    %981 = vmatprep.subr.mxu0 0.0
    %982 = vmatpush1.msra.mxu0 %v940
    %983 = vmatprep.subr.mxu0 0.0
    %984 = vmatpush1.msra.mxu0 %v939
    %985 = vmatprep.subr.mxu0 0.0
    %986 = vmatpush1.msra.mxu0 %v938
    %987 = vmatprep.subr.mxu0 0.0
    %988 = vmatpush1.msra.mxu0 %v937
    %989 = vmatprep.subr.mxu0 0.0
    %990 = vmatpush2.msra.mxu0 0.0
    %991 = vmatprep.subr.mxu0 0.0
    %992 = vmatpush2.msra.mxu0 0.0
    %993 = vmatprep.subr.mxu0 0.0
    %994 = vmatpush2.msra.mxu0 0.0
    %995 = vmatprep.subr.mxu0 0.0
    %996 = vmatpush2.msra.mxu0 0.0
    %997 = vmatprep.subr.mxu0 0.0
    %998 = vmatpush2.msra.mxu0 0.0
    %999 = vmatprep.subr.mxu0 0.0
    %1000 = vmatpush2.msra.mxu0 0.0
    %1001 = vmatprep.subr.mxu0 0.0
    %1002 = vmatpush2.msra.mxu0 0.0
    %1003 = vmatprep.subr.mxu0 0.0
    %1004 = vmatpush2.msra.mxu0 0.0
    %1005 = vmatprep.subr.mxu0 0.0
    %1006 = vmatpush2.msra.mxu0 0.0
    %1007 = vmatprep.subr.mxu0 0.0
    %1008 = vmatpush2.msra.mxu0 0.0
    %1009 = vmatprep.subr.mxu0 0.0
    %1010 = vmatpush2.msra.mxu0 0.0
    %1011 = vmatprep.subr.mxu0 0.0
    %1012 = vmatpush2.msra.mxu0 0.0
    %1013 = vmatprep.subr.mxu0 0.0
    %1014 = vmatpush2.msra.mxu0 0.0
    %1015 = vmatprep.subr.mxu0 0.0
    %1016 = vmatpush2.msra.mxu0 0.0
    %1017 = vmatprep.subr.mxu0 0.0
    %1018 = vmatpush2.msra.mxu0 0.0
    %1019 = vmatprep.subr.mxu0 0.0
    %1020 = vmatpush2.msra.mxu0 0.0
    %1021 = vmatprep.mubr.f32.mxu0 0.0
    %1022 = vmatmul.mubr.f32.gmra.mxu0 %v952
    %v1023 = vpop.f32.mrf.mxu0
    %v1024 = vadd.f32 %v949, %v1023
    %v1025 = vpop.f32.mrf.mxu0
    %1026 = vmatprep.mubr.f32.mxu0 0.0
    %1027 = vmatmul.mubr.f32.gmra.mxu0 %v955
    %v1028 = vpop.f32.mrf.mxu0
    %v1029 = vadd.f32 %v949, %v1028
    %v1030 = vpop.f32.mrf.mxu0
    %1031 = vdwg.mxu0
    %v1032 = vadd.f32 %v843, %v1024
    %v1033 = vadd.f32 %v844, %v1029
    %v1034 = vld [vmem:[#allocation4 + $0xcd] sm:$0x1]
    %v1035 = vld [vmem:[#allocation4 + $0xce] sm:$0x1]
    %v1036 = vsel %vm50, %v1032, 0.0
    %1037 = vadd.xlane.f32.xlu0 %v1036
    %v1038 = vpop.xlane.xlu0 %1037
    %v1039 = vsel %vm50, %v1033, 0.0
    %1040 = vadd.xlane.f32.xlu0 %v1039
    %v1041 = vpop.xlane.xlu0 %1040
    %v1042 = vmul.f32 %v1038, %v812
    %v1043 = vmul.f32 %v1041, %v812
    %v1044 = vsub.f32 %v1032, %v1042
    %v1045 = vsub.f32 %v1033, %v1043
    %v1046 = vmul.f32 %v1044, %v1044
    %v1047 = vmul.f32 %v1045, %v1045
    %v1048 = vsel %vm50, %v1046, 0.0
    %1049 = vadd.xlane.f32.xlu0 %v1048
    %v1050 = vpop.xlane.xlu0 %1049
    %v1051 = vsel %vm50, %v1047, 0.0
    %1052 = vadd.xlane.f32.xlu0 %v1051
    %v1053 = vpop.xlane.xlu0 %1052
    %v1054 = vmul.f32 %v1050, %v812
    %v1055 = vmul.f32 %v1053, %v812
    %v1056 = vadd.f32 %v1054, 1e-05
    %v1057 = vadd.f32 %v1055, 1e-05
    %v1058 = vrsqrt.pop %v1056
    %v1059 = vrsqrt.pop %v1057
    %v1060 = vmul.f32 %v1044, %v1058
    %v1061 = vmul.f32 %v1045, %v1059
    %v1062 = vlaneseq
    %v1063 = vshrl.u32 %v1062, 7
    %v1064 = vsub.s32 0, %v1063
    %v1065 = vrot.slane %v1034, %v1064
    %v1066 = vmul.f32 %v1060, %v1065
    %v1067 = vmul.f32 %v1061, %v1065
    %v1068 = vlaneseq
    %v1069 = vshrl.u32 %v1068, 7
    %v1070 = vsub.s32 0, %v1069
    %v1071 = vrot.slane %v1035, %v1070
    %v1072 = vadd.f32 %v1066, %v1071
    %v1073 = vadd.f32 %v1067, %v1071
    %v1074 = vld [vmem:[#allocation2 + $0xf0] sm:$0xff]
    %v1075 = vld [vmem:[#allocation2 + $0xf8] sm:$0xff]
    %v1076 = vld [vmem:[#allocation2 + $0x100] sm:$0xff]
    %v1077 = vld [vmem:[#allocation2 + $0x108] sm:$0xff]
    %v1078 = vld [vmem:[#allocation2 + $0x110] sm:$0xff]
    %v1079 = vld [vmem:[#allocation2 + $0x118] sm:$0xff]
    %v1080 = vld [vmem:[#allocation2 + $0x120] sm:$0xff]
    %v1081 = vld [vmem:[#allocation2 + $0x128] sm:$0xff]
    %v1082 = vld [vmem:[#allocation2 + $0x130] sm:$0xff]
    %v1083 = vld [vmem:[#allocation2 + $0x138] sm:$0xff]
    %v1084 = vld [vmem:[#allocation2 + $0x140] sm:$0xff]
    %v1085 = vld [vmem:[#allocation2 + $0x148] sm:$0xff]
    %v1086 = vld [vmem:[#allocation2 + $0x150] sm:$0xff]
    %v1087 = vld [vmem:[#allocation2 + $0x158] sm:$0xff]
    %v1088 = vld [vmem:[#allocation2 + $0x160] sm:$0xff]
    %v1089 = vld [vmem:[#allocation2 + $0x168] sm:$0xff]
    %v1090 = vld [vmem:[#allocation2 + $0x170] sm:$0xff]
    %v1091 = vld [vmem:[#allocation2 + $0x178] sm:$0xff]
    %v1092 = vld [vmem:[#allocation2 + $0x180] sm:$0xff]
    %v1093 = vld [vmem:[#allocation2 + $0x188] sm:$0xff]
    %v1094 = vld [vmem:[#allocation2 + $0x190] sm:$0xff]
    %v1095 = vld [vmem:[#allocation2 + $0x198] sm:$0xff]
    %v1096 = vld [vmem:[#allocation2 + $0x1a0] sm:$0xff]
    %v1097 = vld [vmem:[#allocation2 + $0x1a8] sm:$0xff]
    %s1098 = scalar_lea.vmem [#allocation2], 432
    %v1099 = vld [vmem:[%s1098] ss:$8 sm:$0xf]
    %v1100 = vld [vmem:[%s1098] ss:$8 sm:$0x30]
    %v1101 = vor.u32 %v1099, %v1100
    %v1103 = vlaneseq
    %v1104 = vshrl.u32 %v1103, 7
    %v1105 = vsub.s32 0, %v1104
    %v1106 = vrot.slane %v1101, %v1105
    %v1107 = vlaneseq
    %v1108 = vshrl.u32 %v1107, 7
    %v1109 = vsub.s32 1, %v1108
    %v1110 = vrot.slane %v1101, %v1109
    %v1111 = vlaneseq
    %v1112 = vshrl.u32 %v1111, 7
    %v1113 = vsub.s32 2, %v1112
    %v1114 = vrot.slane %v1101, %v1113
    %v1115 = vlaneseq
    %v1116 = vshrl.u32 %v1115, 7
    %v1117 = vsub.s32 3, %v1116
    %v1118 = vrot.slane %v1101, %v1117
    %v1119 = vlaneseq
    %v1120 = vshrl.u32 %v1119, 7
    %v1121 = vsub.s32 4, %v1120
    %v1122 = vrot.slane %v1101, %v1121
    %v1123 = vlaneseq
    %v1124 = vshrl.u32 %v1123, 7
    %v1125 = vsub.s32 5, %v1124
    %v1126 = vrot.slane %v1101, %v1125
    %v1134 = vsel %vm50, %v1072, 0
    %v1137 = vsel %vm50, %v1073, 0
    %1139 = vmatprep.subr.mxu0 0.0
    %1140 = vmatpush1.msra.mxu0 0.0
    %1141 = vmatprep.subr.mxu0 0.0
    %1142 = vmatpush1.msra.mxu0 0.0
    %1143 = vmatprep.subr.mxu0 0.0
    %1144 = vmatpush1.msra.mxu0 0.0
    %1145 = vmatprep.subr.mxu0 0.0
    %1146 = vmatpush1.msra.mxu0 0.0
    %1147 = vmatprep.subr.mxu0 0.0
    %1148 = vmatpush1.msra.mxu0 0.0
    %1149 = vmatprep.subr.mxu0 0.0
    %1150 = vmatpush1.msra.mxu0 0.0
    %1151 = vmatprep.subr.mxu0 0.0
    %1152 = vmatpush1.msra.mxu0 0.0
    %1153 = vmatprep.subr.mxu0 0.0
    %1154 = vmatpush1.msra.mxu0 0.0
    %1155 = vmatprep.subr.mxu0 0.0
    %1156 = vmatpush1.msra.mxu0 0.0
    %1157 = vmatprep.subr.mxu0 0.0
    %1158 = vmatpush1.msra.mxu0 0.0
    %1159 = vmatprep.subr.mxu0 0.0
    %1160 = vmatpush1.msra.mxu0 0.0
    %1161 = vmatprep.subr.mxu0 0.0
    %1162 = vmatpush1.msra.mxu0 0.0
    %1163 = vmatprep.subr.mxu0 %v1093
    %1164 = vmatpush1.msra.mxu0 %v1092
    %1165 = vmatprep.subr.mxu0 %v1087
    %1166 = vmatpush1.msra.mxu0 %v1086
    %1167 = vmatprep.subr.mxu0 %v1081
    %1168 = vmatpush1.msra.mxu0 %v1080
    %1169 = vmatprep.subr.mxu0 %v1075
    %1170 = vmatpush1.msra.mxu0 %v1074
    %1171 = vmatprep.subr.mxu0 0.0
    %1172 = vmatpush2.msra.mxu0 0.0
    %1173 = vmatprep.subr.mxu0 0.0
    %1174 = vmatpush2.msra.mxu0 0.0
    %1175 = vmatprep.subr.mxu0 0.0
    %1176 = vmatpush2.msra.mxu0 0.0
    %1177 = vmatprep.subr.mxu0 0.0
    %1178 = vmatpush2.msra.mxu0 0.0
    %1179 = vmatprep.subr.mxu0 0.0
    %1180 = vmatpush2.msra.mxu0 0.0
    %1181 = vmatprep.subr.mxu0 0.0
    %1182 = vmatpush2.msra.mxu0 0.0
    %1183 = vmatprep.subr.mxu0 0.0
    %1184 = vmatpush2.msra.mxu0 0.0
    %1185 = vmatprep.subr.mxu0 0.0
    %1186 = vmatpush2.msra.mxu0 0.0
    %1187 = vmatprep.subr.mxu0 0.0
    %1188 = vmatpush2.msra.mxu0 0.0
    %1189 = vmatprep.subr.mxu0 0.0
    %1190 = vmatpush2.msra.mxu0 0.0
    %1191 = vmatprep.subr.mxu0 0.0
    %1192 = vmatpush2.msra.mxu0 0.0
    %1193 = vmatprep.subr.mxu0 0.0
    %1194 = vmatpush2.msra.mxu0 0.0
    %1195 = vmatprep.subr.mxu0 0.0
    %1196 = vmatpush2.msra.mxu0 0.0
    %1197 = vmatprep.subr.mxu0 0.0
    %1198 = vmatpush2.msra.mxu0 0.0
    %1199 = vmatprep.subr.mxu0 0.0
    %1200 = vmatpush2.msra.mxu0 0.0
    %1201 = vmatprep.subr.mxu0 0.0
    %1202 = vmatpush2.msra.mxu0 0.0
    %1203 = vmatprep.mubr.f32.mxu0 0.0
    %1204 = vmatmul.mubr.f32.gmra.mxu0 %v1134
    %v1205 = vpop.f32.mrf.mxu0
    %v1206 = vadd.f32 %v1106, %v1205
    %v1207 = vpop.f32.mrf.mxu0
    %v1208 = vadd.f32 %v1110, %v1207
    %1209 = vmatprep.mubr.f32.mxu0 0.0
    %1210 = vmatmul.mubr.f32.gmra.mxu0 %v1137
    %v1211 = vpop.f32.mrf.mxu0
    %v1212 = vadd.f32 %v1106, %v1211
    %v1213 = vpop.f32.mrf.mxu0
    %v1214 = vadd.f32 %v1110, %v1213
    %1215 = vdwg.mxu0
    %1216 = vmatprep.subr.mxu0 0.0
    %1217 = vmatpush1.msra.mxu0 0.0
    %1218 = vmatprep.subr.mxu0 0.0
    %1219 = vmatpush1.msra.mxu0 0.0
    %1220 = vmatprep.subr.mxu0 0.0
    %1221 = vmatpush1.msra.mxu0 0.0
    %1222 = vmatprep.subr.mxu0 0.0
    %1223 = vmatpush1.msra.mxu0 0.0
    %1224 = vmatprep.subr.mxu0 0.0
    %1225 = vmatpush1.msra.mxu0 0.0
    %1226 = vmatprep.subr.mxu0 0.0
    %1227 = vmatpush1.msra.mxu0 0.0
    %1228 = vmatprep.subr.mxu0 0.0
    %1229 = vmatpush1.msra.mxu0 0.0
    %1230 = vmatprep.subr.mxu0 0.0
    %1231 = vmatpush1.msra.mxu0 0.0
    %1232 = vmatprep.subr.mxu0 0.0
    %1233 = vmatpush1.msra.mxu0 0.0
    %1234 = vmatprep.subr.mxu0 0.0
    %1235 = vmatpush1.msra.mxu0 0.0
    %1236 = vmatprep.subr.mxu0 0.0
    %1237 = vmatpush1.msra.mxu0 0.0
    %1238 = vmatprep.subr.mxu0 0.0
    %1239 = vmatpush1.msra.mxu0 0.0
    %1240 = vmatprep.subr.mxu0 %v1095
    %1241 = vmatpush1.msra.mxu0 %v1094
    %1242 = vmatprep.subr.mxu0 %v1089
    %1243 = vmatpush1.msra.mxu0 %v1088
    %1244 = vmatprep.subr.mxu0 %v1083
    %1245 = vmatpush1.msra.mxu0 %v1082
    %1246 = vmatprep.subr.mxu0 %v1077
    %1247 = vmatpush1.msra.mxu0 %v1076
    %1248 = vmatprep.subr.mxu0 0.0
    %1249 = vmatpush2.msra.mxu0 0.0
    %1250 = vmatprep.subr.mxu0 0.0
    %1251 = vmatpush2.msra.mxu0 0.0
    %1252 = vmatprep.subr.mxu0 0.0
    %1253 = vmatpush2.msra.mxu0 0.0
    %1254 = vmatprep.subr.mxu0 0.0
    %1255 = vmatpush2.msra.mxu0 0.0
    %1256 = vmatprep.subr.mxu0 0.0
    %1257 = vmatpush2.msra.mxu0 0.0
    %1258 = vmatprep.subr.mxu0 0.0
    %1259 = vmatpush2.msra.mxu0 0.0
    %1260 = vmatprep.subr.mxu0 0.0
    %1261 = vmatpush2.msra.mxu0 0.0
    %1262 = vmatprep.subr.mxu0 0.0
    %1263 = vmatpush2.msra.mxu0 0.0
    %1264 = vmatprep.subr.mxu0 0.0
    %1265 = vmatpush2.msra.mxu0 0.0
    %1266 = vmatprep.subr.mxu0 0.0
    %1267 = vmatpush2.msra.mxu0 0.0
    %1268 = vmatprep.subr.mxu0 0.0
    %1269 = vmatpush2.msra.mxu0 0.0
    %1270 = vmatprep.subr.mxu0 0.0
    %1271 = vmatpush2.msra.mxu0 0.0
    %1272 = vmatprep.subr.mxu0 0.0
    %1273 = vmatpush2.msra.mxu0 0.0
    %1274 = vmatprep.subr.mxu0 0.0
    %1275 = vmatpush2.msra.mxu0 0.0
    %1276 = vmatprep.subr.mxu0 0.0
    %1277 = vmatpush2.msra.mxu0 0.0
    %1278 = vmatprep.subr.mxu0 0.0
    %1279 = vmatpush2.msra.mxu0 0.0
    %1280 = vmatprep.mubr.f32.mxu0 0.0
    %1281 = vmatmul.mubr.f32.gmra.mxu0 %v1134
    %v1282 = vpop.f32.mrf.mxu0
    %v1283 = vadd.f32 %v1114, %v1282
    %v1284 = vpop.f32.mrf.mxu0
    %v1285 = vadd.f32 %v1118, %v1284
    %1286 = vmatprep.mubr.f32.mxu0 0.0
    %1287 = vmatmul.mubr.f32.gmra.mxu0 %v1137
    %v1288 = vpop.f32.mrf.mxu0
    %v1289 = vadd.f32 %v1114, %v1288
    %v1290 = vpop.f32.mrf.mxu0
    %v1291 = vadd.f32 %v1118, %v1290
    %1292 = vdwg.mxu0
    %1293 = vmatprep.subr.mxu0 0.0
    %1294 = vmatpush1.msra.mxu0 0.0
    %1295 = vmatprep.subr.mxu0 0.0
    %1296 = vmatpush1.msra.mxu0 0.0
    %1297 = vmatprep.subr.mxu0 0.0
    %1298 = vmatpush1.msra.mxu0 0.0
    %1299 = vmatprep.subr.mxu0 0.0
    %1300 = vmatpush1.msra.mxu0 0.0
    %1301 = vmatprep.subr.mxu0 0.0
    %1302 = vmatpush1.msra.mxu0 0.0
    %1303 = vmatprep.subr.mxu0 0.0
    %1304 = vmatpush1.msra.mxu0 0.0
    %1305 = vmatprep.subr.mxu0 0.0
    %1306 = vmatpush1.msra.mxu0 0.0
    %1307 = vmatprep.subr.mxu0 0.0
    %1308 = vmatpush1.msra.mxu0 0.0
    %1309 = vmatprep.subr.mxu0 0.0
    %1310 = vmatpush1.msra.mxu0 0.0
    %1311 = vmatprep.subr.mxu0 0.0
    %1312 = vmatpush1.msra.mxu0 0.0
    %1313 = vmatprep.subr.mxu0 0.0
    %1314 = vmatpush1.msra.mxu0 0.0
    %1315 = vmatprep.subr.mxu0 0.0
    %1316 = vmatpush1.msra.mxu0 0.0
    %1317 = vmatprep.subr.mxu0 %v1097
    %1318 = vmatpush1.msra.mxu0 %v1096
    %1319 = vmatprep.subr.mxu0 %v1091
    %1320 = vmatpush1.msra.mxu0 %v1090
    %1321 = vmatprep.subr.mxu0 %v1085
    %1322 = vmatpush1.msra.mxu0 %v1084
    %1323 = vmatprep.subr.mxu0 %v1079
    %1324 = vmatpush1.msra.mxu0 %v1078
    %1325 = vmatprep.subr.mxu0 0.0
    %1326 = vmatpush2.msra.mxu0 0.0
    %1327 = vmatprep.subr.mxu0 0.0
    %1328 = vmatpush2.msra.mxu0 0.0
    %1329 = vmatprep.subr.mxu0 0.0
    %1330 = vmatpush2.msra.mxu0 0.0
    %1331 = vmatprep.subr.mxu0 0.0
    %1332 = vmatpush2.msra.mxu0 0.0
    %1333 = vmatprep.subr.mxu0 0.0
    %1334 = vmatpush2.msra.mxu0 0.0
    %1335 = vmatprep.subr.mxu0 0.0
    %1336 = vmatpush2.msra.mxu0 0.0
    %1337 = vmatprep.subr.mxu0 0.0
    %1338 = vmatpush2.msra.mxu0 0.0
    %1339 = vmatprep.subr.mxu0 0.0
    %1340 = vmatpush2.msra.mxu0 0.0
    %1341 = vmatprep.subr.mxu0 0.0
    %1342 = vmatpush2.msra.mxu0 0.0
    %1343 = vmatprep.subr.mxu0 0.0
    %1344 = vmatpush2.msra.mxu0 0.0
    %1345 = vmatprep.subr.mxu0 0.0
    %1346 = vmatpush2.msra.mxu0 0.0
    %1347 = vmatprep.subr.mxu0 0.0
    %1348 = vmatpush2.msra.mxu0 0.0
    %1349 = vmatprep.subr.mxu0 0.0
    %1350 = vmatpush2.msra.mxu0 0.0
    %1351 = vmatprep.subr.mxu0 0.0
    %1352 = vmatpush2.msra.mxu0 0.0
    %1353 = vmatprep.subr.mxu0 0.0
    %1354 = vmatpush2.msra.mxu0 0.0
    %1355 = vmatprep.subr.mxu0 0.0
    %1356 = vmatpush2.msra.mxu0 0.0
    %1357 = vmatprep.mubr.f32.mxu0 0.0
    %1358 = vmatmul.mubr.f32.gmra.mxu0 %v1134
    %v1359 = vpop.f32.mrf.mxu0
    %v1360 = vadd.f32 %v1122, %v1359
    %v1361 = vpop.f32.mrf.mxu0
    %v1362 = vadd.f32 %v1126, %v1361
    %1363 = vmatprep.mubr.f32.mxu0 0.0
    %1364 = vmatmul.mubr.f32.gmra.mxu0 %v1137
    %v1365 = vpop.f32.mrf.mxu0
    %v1366 = vadd.f32 %v1122, %v1365
    %v1367 = vpop.f32.mrf.mxu0
    %v1368 = vadd.f32 %v1126, %v1367
    %1369 = vdwg.mxu0
    %1370 = vmatprep.subr.mxu0 0.0
    %1371 = vmatpush1.xpose.msra.mxu0 0.0
    %1372 = vmatprep.subr.mxu0 0.0
    %1373 = vmatpush1.xpose.msra.mxu0 0.0
    %1374 = vmatprep.subr.mxu0 0.0
    %1375 = vmatpush1.xpose.msra.mxu0 0.0
    %1376 = vmatprep.subr.mxu0 0.0
    %1377 = vmatpush1.xpose.msra.mxu0 0.0
    %1378 = vmatprep.subr.mxu0 0.0
    %1379 = vmatpush1.xpose.msra.mxu0 0.0
    %1380 = vmatprep.subr.mxu0 0.0
    %1381 = vmatpush1.xpose.msra.mxu0 0.0
    %1382 = vmatprep.subr.mxu0 0.0
    %1383 = vmatpush1.xpose.msra.mxu0 0.0
    %1384 = vmatprep.subr.mxu0 0.0
    %1385 = vmatpush1.xpose.msra.mxu0 0.0
    %1386 = vmatprep.subr.mxu0 0.0
    %1387 = vmatpush1.xpose.msra.mxu0 0.0
    %1388 = vmatprep.subr.mxu0 0.0
    %1389 = vmatpush1.xpose.msra.mxu0 0.0
    %1390 = vmatprep.subr.mxu0 0.0
    %1391 = vmatpush1.xpose.msra.mxu0 0.0
    %1392 = vmatprep.subr.mxu0 0.0
    %1393 = vmatpush1.xpose.msra.mxu0 0.0
    %1394 = vmatprep.subr.mxu0 0.0
    %1395 = vmatpush1.xpose.msra.mxu0 0.0
    %1396 = vmatprep.subr.mxu0 0.0
    %1397 = vmatpush1.xpose.msra.mxu0 0.0
    %1398 = vmatprep.subr.mxu0 0.0
    %1399 = vmatpush1.xpose.msra.mxu0 %v1289
    %1400 = vmatprep.subr.mxu0 0.0
    %1401 = vmatpush1.xpose.msra.mxu0 %v1283
    %1402 = vmatprep.subr.mxu0 0.0
    %1403 = vmatpush2.xpose.msra.mxu0 0.0
    %1404 = vmatprep.subr.mxu0 0.0
    %1405 = vmatpush2.xpose.msra.mxu0 0.0
    %1406 = vmatprep.subr.mxu0 0.0
    %1407 = vmatpush2.xpose.msra.mxu0 0.0
    %1408 = vmatprep.subr.mxu0 0.0
    %1409 = vmatpush2.xpose.msra.mxu0 0.0
    %1410 = vmatprep.subr.mxu0 0.0
    %1411 = vmatpush2.xpose.msra.mxu0 0.0
    %1412 = vmatprep.subr.mxu0 0.0
    %1413 = vmatpush2.xpose.msra.mxu0 0.0
    %1414 = vmatprep.subr.mxu0 0.0
    %1415 = vmatpush2.xpose.msra.mxu0 0.0
    %1416 = vmatprep.subr.mxu0 0.0
    %1417 = vmatpush2.xpose.msra.mxu0 0.0
    %1418 = vmatprep.subr.mxu0 0.0
    %1419 = vmatpush2.xpose.msra.mxu0 0.0
    %1420 = vmatprep.subr.mxu0 0.0
    %1421 = vmatpush2.xpose.msra.mxu0 0.0
    %1422 = vmatprep.subr.mxu0 0.0
    %1423 = vmatpush2.xpose.msra.mxu0 0.0
    %1424 = vmatprep.subr.mxu0 0.0
    %1425 = vmatpush2.xpose.msra.mxu0 0.0
    %1426 = vmatprep.subr.mxu0 0.0
    %1427 = vmatpush2.xpose.msra.mxu0 0.0
    %1428 = vmatprep.subr.mxu0 0.0
    %1429 = vmatpush2.xpose.msra.mxu0 0.0
    %1430 = vmatprep.subr.mxu0 0.0
    %1431 = vmatpush2.xpose.msra.mxu0 0.0
    %1432 = vmatprep.subr.mxu0 0.0
    %1433 = vmatpush2.xpose.msra.mxu0 0.0
    %1434 = vmatprep.mubr.f32.mxu0 0.0
    %1435 = vmatmul.mubr.f32.gmra.mxu0 %v1206
    %v1436 = vpop.f32.mrf.mxu0
    %v1437 = vadd.f32 0.0, %v1436
    %v1438 = vpop.f32.mrf.mxu0
    %1439 = vmatprep.mubr.f32.mxu0 0.0
    %1440 = vmatmul.mubr.f32.gmra.mxu0 %v1212
    %v1441 = vpop.f32.mrf.mxu0
    %v1442 = vadd.f32 0.0, %v1441
    %v1443 = vpop.f32.mrf.mxu0
    %1444 = vdwg.mxu0
    %v1445 = vmul.f32 %v1437, 0.25
    %v1446 = vmul.f32 %v1442, 0.25
    %v1447 = vadd.f32 %v1445, %v132
    %v1448 = vadd.f32 %v1446, %v133
    %v1449 = vsel %vm509, %v1447, -inf
    %1450 = vmax.xlane.f32.xlu0 %v1449
    %v1451 = vpop.xlane.xlu0 %1450
    %v1452 = vsel %vm509, %v1448, -inf
    %1453 = vmax.xlane.f32.xlu0 %v1452
    %v1454 = vpop.xlane.xlu0 %1453
    %v1455 = vsub.f32 %v1447, %v1451
    %v1456 = vsub.f32 %v1448, %v1454
    %v1457 = vmul.f32 %v1455, 1.442695
    %v1458 = vpow.pop %v1457
    %v1459 = vmul.f32 %v1456, 1.442695
    %v1460 = vpow.pop %v1459
    %v1461 = vsel %vm509, %v1458, 0.0
    %1462 = vadd.xlane.f32.xlu0 %v1461
    %v1463 = vpop.xlane.xlu0 %1462
    %v1464 = vsel %vm509, %v1460, 0.0
    %1465 = vadd.xlane.f32.xlu0 %v1464
    %v1466 = vpop.xlane.xlu0 %1465
    %v1467 = vrcp.pop %v1463
    %v1468 = vrcp.pop %v1466
    %v1469 = vmul.f32 %v1458, %v1467
    %v1470 = vmul.f32 %v1460, %v1468
    %1471 = vmatprep.subr.mxu0 0.0
    %1472 = vmatpush1.xpose.msra.mxu0 0.0
    %1473 = vmatprep.subr.mxu0 0.0
    %1474 = vmatpush1.xpose.msra.mxu0 0.0
    %1475 = vmatprep.subr.mxu0 0.0
    %1476 = vmatpush1.xpose.msra.mxu0 0.0
    %1477 = vmatprep.subr.mxu0 0.0
    %1478 = vmatpush1.xpose.msra.mxu0 0.0
    %1479 = vmatprep.subr.mxu0 0.0
    %1480 = vmatpush1.xpose.msra.mxu0 0.0
    %1481 = vmatprep.subr.mxu0 0.0
    %1482 = vmatpush1.xpose.msra.mxu0 0.0
    %1483 = vmatprep.subr.mxu0 0.0
    %1484 = vmatpush1.xpose.msra.mxu0 0.0
    %1485 = vmatprep.subr.mxu0 0.0
    %1486 = vmatpush1.xpose.msra.mxu0 0.0
    %1487 = vmatprep.subr.mxu0 0.0
    %1488 = vmatpush1.xpose.msra.mxu0 0.0
    %1489 = vmatprep.subr.mxu0 0.0
    %1490 = vmatpush1.xpose.msra.mxu0 0.0
    %1491 = vmatprep.subr.mxu0 0.0
    %1492 = vmatpush1.xpose.msra.mxu0 0.0
    %1493 = vmatprep.subr.mxu0 0.0
    %1494 = vmatpush1.xpose.msra.mxu0 0.0
    %1495 = vmatprep.subr.mxu0 0.0
    %1496 = vmatpush1.xpose.msra.mxu0 0.0
    %1497 = vmatprep.subr.mxu0 0.0
    %1498 = vmatpush1.xpose.msra.mxu0 0.0
    %1499 = vmatprep.subr.mxu0 0.0
    %1500 = vmatpush1.xpose.msra.mxu0 %v1291
    %1501 = vmatprep.subr.mxu0 0.0
    %1502 = vmatpush1.xpose.msra.mxu0 %v1285
    %1503 = vmatprep.subr.mxu0 0.0
    %1504 = vmatpush2.xpose.msra.mxu0 0.0
    %1505 = vmatprep.subr.mxu0 0.0
    %1506 = vmatpush2.xpose.msra.mxu0 0.0
    %1507 = vmatprep.subr.mxu0 0.0
    %1508 = vmatpush2.xpose.msra.mxu0 0.0
    %1509 = vmatprep.subr.mxu0 0.0
    %1510 = vmatpush2.xpose.msra.mxu0 0.0
    %1511 = vmatprep.subr.mxu0 0.0
    %1512 = vmatpush2.xpose.msra.mxu0 0.0
    %1513 = vmatprep.subr.mxu0 0.0
    %1514 = vmatpush2.xpose.msra.mxu0 0.0
    %1515 = vmatprep.subr.mxu0 0.0
    %1516 = vmatpush2.xpose.msra.mxu0 0.0
    %1517 = vmatprep.subr.mxu0 0.0
    %1518 = vmatpush2.xpose.msra.mxu0 0.0
    %1519 = vmatprep.subr.mxu0 0.0
    %1520 = vmatpush2.xpose.msra.mxu0 0.0
    %1521 = vmatprep.subr.mxu0 0.0
    %1522 = vmatpush2.xpose.msra.mxu0 0.0
    %1523 = vmatprep.subr.mxu0 0.0
    %1524 = vmatpush2.xpose.msra.mxu0 0.0
    %1525 = vmatprep.subr.mxu0 0.0
    %1526 = vmatpush2.xpose.msra.mxu0 0.0
    %1527 = vmatprep.subr.mxu0 0.0
    %1528 = vmatpush2.xpose.msra.mxu0 0.0
    %1529 = vmatprep.subr.mxu0 0.0
    %1530 = vmatpush2.xpose.msra.mxu0 0.0
    %1531 = vmatprep.subr.mxu0 0.0
    %1532 = vmatpush2.xpose.msra.mxu0 0.0
    %1533 = vmatprep.subr.mxu0 0.0
    %1534 = vmatpush2.xpose.msra.mxu0 0.0
    %1535 = vmatprep.mubr.f32.mxu0 0.0
    %1536 = vmatmul.mubr.f32.gmra.mxu0 %v1208
    %v1537 = vpop.f32.mrf.mxu0
    %v1538 = vadd.f32 0.0, %v1537
    %v1539 = vpop.f32.mrf.mxu0
    %1540 = vmatprep.mubr.f32.mxu0 0.0
    %1541 = vmatmul.mubr.f32.gmra.mxu0 %v1214
    %v1542 = vpop.f32.mrf.mxu0
    %v1543 = vadd.f32 0.0, %v1542
    %v1544 = vpop.f32.mrf.mxu0
    %1545 = vdwg.mxu0
    %v1546 = vmul.f32 %v1538, 0.25
    %v1547 = vmul.f32 %v1543, 0.25
    %v1548 = vadd.f32 %v1546, %v132
    %v1549 = vadd.f32 %v1547, %v133
    %v1550 = vsel %vm509, %v1548, -inf
    %1551 = vmax.xlane.f32.xlu0 %v1550
    %v1552 = vpop.xlane.xlu0 %1551
    %v1553 = vsel %vm509, %v1549, -inf
    %1554 = vmax.xlane.f32.xlu0 %v1553
    %v1555 = vpop.xlane.xlu0 %1554
    %v1556 = vsub.f32 %v1548, %v1552
    %v1557 = vsub.f32 %v1549, %v1555
    %v1558 = vmul.f32 %v1556, 1.442695
    %v1559 = vpow.pop %v1558
    %v1560 = vmul.f32 %v1557, 1.442695
    %v1561 = vpow.pop %v1560
    %v1562 = vsel %vm509, %v1559, 0.0
    %1563 = vadd.xlane.f32.xlu0 %v1562
    %v1564 = vpop.xlane.xlu0 %1563
    %v1565 = vsel %vm509, %v1561, 0.0
    %1566 = vadd.xlane.f32.xlu0 %v1565
    %v1567 = vpop.xlane.xlu0 %1566
    %v1568 = vrcp.pop %v1564
    %v1569 = vrcp.pop %v1567
    %v1570 = vmul.f32 %v1559, %v1568
    %v1571 = vmul.f32 %v1561, %v1569
    %v1573 = vsel %vm509, %v1570, 0
    %v1576 = vsel %vm509, %v1571, 0
    %1578 = vmatprep.subr.mxu0 0.0
    %1579 = vmatpush1.msra.mxu0 0.0
    %1580 = vmatprep.subr.mxu0 0.0
    %1581 = vmatpush1.msra.mxu0 0.0
    %1582 = vmatprep.subr.mxu0 0.0
    %1583 = vmatpush1.msra.mxu0 0.0
    %1584 = vmatprep.subr.mxu0 0.0
    %1585 = vmatpush1.msra.mxu0 0.0
    %1586 = vmatprep.subr.mxu0 0.0
    %1587 = vmatpush1.msra.mxu0 0.0
    %1588 = vmatprep.subr.mxu0 0.0
    %1589 = vmatpush1.msra.mxu0 0.0
    %1590 = vmatprep.subr.mxu0 0.0
    %1591 = vmatpush1.msra.mxu0 0.0
    %1592 = vmatprep.subr.mxu0 0.0
    %1593 = vmatpush1.msra.mxu0 0.0
    %1594 = vmatprep.subr.mxu0 0.0
    %1595 = vmatpush1.msra.mxu0 0.0
    %1596 = vmatprep.subr.mxu0 0.0
    %1597 = vmatpush1.msra.mxu0 0.0
    %1598 = vmatprep.subr.mxu0 0.0
    %1599 = vmatpush1.msra.mxu0 0.0
    %1600 = vmatprep.subr.mxu0 0.0
    %1601 = vmatpush1.msra.mxu0 0.0
    %1602 = vmatprep.subr.mxu0 0.0
    %1603 = vmatpush1.msra.mxu0 0.0
    %1604 = vmatprep.subr.mxu0 0.0
    %1605 = vmatpush1.msra.mxu0 0.0
    %1606 = vmatprep.subr.mxu0 0.0
    %1607 = vmatpush1.msra.mxu0 %v1368
    %1608 = vmatprep.subr.mxu0 0.0
    %1609 = vmatpush1.msra.mxu0 %v1362
    %1610 = vmatprep.subr.mxu0 0.0
    %1611 = vmatpush2.msra.mxu0 0.0
    %1612 = vmatprep.subr.mxu0 0.0
    %1613 = vmatpush2.msra.mxu0 0.0
    %1614 = vmatprep.subr.mxu0 0.0
    %1615 = vmatpush2.msra.mxu0 0.0
    %1616 = vmatprep.subr.mxu0 0.0
    %1617 = vmatpush2.msra.mxu0 0.0
    %1618 = vmatprep.subr.mxu0 0.0
    %1619 = vmatpush2.msra.mxu0 0.0
    %1620 = vmatprep.subr.mxu0 0.0
    %1621 = vmatpush2.msra.mxu0 0.0
    %1622 = vmatprep.subr.mxu0 0.0
    %1623 = vmatpush2.msra.mxu0 0.0
    %1624 = vmatprep.subr.mxu0 0.0
    %1625 = vmatpush2.msra.mxu0 0.0
    %1626 = vmatprep.subr.mxu0 0.0
    %1627 = vmatpush2.msra.mxu0 0.0
    %1628 = vmatprep.subr.mxu0 0.0
    %1629 = vmatpush2.msra.mxu0 0.0
    %1630 = vmatprep.subr.mxu0 0.0
    %1631 = vmatpush2.msra.mxu0 0.0
    %1632 = vmatprep.subr.mxu0 0.0
    %1633 = vmatpush2.msra.mxu0 0.0
    %1634 = vmatprep.subr.mxu0 0.0
    %1635 = vmatpush2.msra.mxu0 0.0
    %1636 = vmatprep.subr.mxu0 0.0
    %1637 = vmatpush2.msra.mxu0 0.0
    %1638 = vmatprep.subr.mxu0 0.0
    %1639 = vmatpush2.msra.mxu0 0.0
    %1640 = vmatprep.subr.mxu0 0.0
    %1641 = vmatpush2.msra.mxu0 0.0
    %1642 = vmatprep.mubr.f32.mxu0 0.0
    %1643 = vmatmul.mubr.f32.gmra.mxu0 %v1573
    %v1644 = vpop.f32.mrf.mxu0
    %v1645 = vadd.f32 0.0, %v1644
    %v1646 = vpop.f32.mrf.mxu0
    %1647 = vmatprep.mubr.f32.mxu0 0.0
    %1648 = vmatmul.mubr.f32.gmra.mxu0 %v1576
    %v1649 = vpop.f32.mrf.mxu0
    %v1650 = vadd.f32 0.0, %v1649
    %v1651 = vpop.f32.mrf.mxu0
    %1652 = vdwg.mxu0
    %v1654 = vsel %vm509, %v1469, 0
    %v1657 = vsel %vm509, %v1470, 0
    %1659 = vmatprep.subr.mxu0 0.0
    %1660 = vmatpush1.msra.mxu0 0.0
    %1661 = vmatprep.subr.mxu0 0.0
    %1662 = vmatpush1.msra.mxu0 0.0
    %1663 = vmatprep.subr.mxu0 0.0
    %1664 = vmatpush1.msra.mxu0 0.0
    %1665 = vmatprep.subr.mxu0 0.0
    %1666 = vmatpush1.msra.mxu0 0.0
    %1667 = vmatprep.subr.mxu0 0.0
    %1668 = vmatpush1.msra.mxu0 0.0
    %1669 = vmatprep.subr.mxu0 0.0
    %1670 = vmatpush1.msra.mxu0 0.0
    %1671 = vmatprep.subr.mxu0 0.0
    %1672 = vmatpush1.msra.mxu0 0.0
    %1673 = vmatprep.subr.mxu0 0.0
    %1674 = vmatpush1.msra.mxu0 0.0
    %1675 = vmatprep.subr.mxu0 0.0
    %1676 = vmatpush1.msra.mxu0 0.0
    %1677 = vmatprep.subr.mxu0 0.0
    %1678 = vmatpush1.msra.mxu0 0.0
    %1679 = vmatprep.subr.mxu0 0.0
    %1680 = vmatpush1.msra.mxu0 0.0
    %1681 = vmatprep.subr.mxu0 0.0
    %1682 = vmatpush1.msra.mxu0 0.0
    %1683 = vmatprep.subr.mxu0 0.0
    %1684 = vmatpush1.msra.mxu0 0.0
    %1685 = vmatprep.subr.mxu0 0.0
    %1686 = vmatpush1.msra.mxu0 0.0
    %1687 = vmatprep.subr.mxu0 0.0
    %1688 = vmatpush1.msra.mxu0 %v1366
    %1689 = vmatprep.subr.mxu0 0.0
    %1690 = vmatpush1.msra.mxu0 %v1360
    %1691 = vmatprep.subr.mxu0 0.0
    %1692 = vmatpush2.msra.mxu0 0.0
    %1693 = vmatprep.subr.mxu0 0.0
    %1694 = vmatpush2.msra.mxu0 0.0
    %1695 = vmatprep.subr.mxu0 0.0
    %1696 = vmatpush2.msra.mxu0 0.0
    %1697 = vmatprep.subr.mxu0 0.0
    %1698 = vmatpush2.msra.mxu0 0.0
    %1699 = vmatprep.subr.mxu0 0.0
    %1700 = vmatpush2.msra.mxu0 0.0
    %1701 = vmatprep.subr.mxu0 0.0
    %1702 = vmatpush2.msra.mxu0 0.0
    %1703 = vmatprep.subr.mxu0 0.0
    %1704 = vmatpush2.msra.mxu0 0.0
    %1705 = vmatprep.subr.mxu0 0.0
    %1706 = vmatpush2.msra.mxu0 0.0
    %1707 = vmatprep.subr.mxu0 0.0
    %1708 = vmatpush2.msra.mxu0 0.0
    %1709 = vmatprep.subr.mxu0 0.0
    %1710 = vmatpush2.msra.mxu0 0.0
    %1711 = vmatprep.subr.mxu0 0.0
    %1712 = vmatpush2.msra.mxu0 0.0
    %1713 = vmatprep.subr.mxu0 0.0
    %1714 = vmatpush2.msra.mxu0 0.0
    %1715 = vmatprep.subr.mxu0 0.0
    %1716 = vmatpush2.msra.mxu0 0.0
    %1717 = vmatprep.subr.mxu0 0.0
    %1718 = vmatpush2.msra.mxu0 0.0
    %1719 = vmatprep.subr.mxu0 0.0
    %1720 = vmatpush2.msra.mxu0 0.0
    %1721 = vmatprep.subr.mxu0 0.0
    %1722 = vmatpush2.msra.mxu0 0.0
    %1723 = vmatprep.mubr.f32.mxu0 0.0
    %1724 = vmatmul.mubr.f32.gmra.mxu0 %v1654
    %v1725 = vpop.f32.mrf.mxu0
    %v1726 = vadd.f32 %v1645, %v1725
    %v1727 = vpop.f32.mrf.mxu0
    %1728 = vmatprep.mubr.f32.mxu0 0.0
    %1729 = vmatmul.mubr.f32.gmra.mxu0 %v1657
    %v1730 = vpop.f32.mrf.mxu0
    %v1731 = vadd.f32 %v1650, %v1730
    %v1732 = vpop.f32.mrf.mxu0
    %1733 = vdwg.mxu0
    %v1734 = vld [vmem:[#allocation4 + $0x132] sm:$0x1]
    %v1735 = vlaneseq
    %v1736 = vshrl.u32 %v1735, 7
    %v1737 = vsub.s32 0, %v1736
    %v1738 = vrot.slane %v1734, %v1737
    %v1739 = vadd.f32 %v1726, %v1738
    %v1740 = vadd.f32 %v1731, %v1738
    %v1741 = vadd.f32 %v1072, %v1739
    %v1742 = vadd.f32 %v1073, %v1740
    %v1743 = vld [vmem:[#allocation4 + $0x133] sm:$0x1]
    %v1744 = vld [vmem:[#allocation4 + $0x134] sm:$0x1]
    %v1745 = vsel %vm50, %v1741, 0.0
    %1746 = vadd.xlane.f32.xlu0 %v1745
    %v1747 = vpop.xlane.xlu0 %1746
    %v1748 = vsel %vm50, %v1742, 0.0
    %1749 = vadd.xlane.f32.xlu0 %v1748
    %v1750 = vpop.xlane.xlu0 %1749
    %v1751 = vmul.f32 %v1747, %v812
    %v1752 = vmul.f32 %v1750, %v812
    %v1753 = vsub.f32 %v1741, %v1751
    %v1754 = vsub.f32 %v1742, %v1752
    %v1755 = vmul.f32 %v1753, %v1753
    %v1756 = vmul.f32 %v1754, %v1754
    %v1757 = vsel %vm50, %v1755, 0.0
    %1758 = vadd.xlane.f32.xlu0 %v1757
    %v1759 = vpop.xlane.xlu0 %1758
    %v1760 = vsel %vm50, %v1756, 0.0
    %1761 = vadd.xlane.f32.xlu0 %v1760
    %v1762 = vpop.xlane.xlu0 %1761
    %v1763 = vmul.f32 %v1759, %v812
    %v1764 = vmul.f32 %v1762, %v812
    %v1765 = vadd.f32 %v1763, 1e-05
    %v1766 = vadd.f32 %v1764, 1e-05
    %v1767 = vrsqrt.pop %v1765
    %v1768 = vrsqrt.pop %v1766
    %v1769 = vmul.f32 %v1753, %v1767
    %v1770 = vmul.f32 %v1754, %v1768
    %v1771 = vlaneseq
    %v1772 = vshrl.u32 %v1771, 7
    %v1773 = vsub.s32 0, %v1772
    %v1774 = vrot.slane %v1743, %v1773
    %v1775 = vmul.f32 %v1769, %v1774
    %v1776 = vmul.f32 %v1770, %v1774
    %v1777 = vlaneseq
    %v1778 = vshrl.u32 %v1777, 7
    %v1779 = vsub.s32 0, %v1778
    %v1780 = vrot.slane %v1744, %v1779
    %v1781 = vadd.f32 %v1775, %v1780
    %v1782 = vadd.f32 %v1776, %v1780
    %v1783 = vld [vmem:[#allocation4 + $0xd0] sm:$0xff]
    %v1784 = vld [vmem:[#allocation4 + $0xd8] sm:$0xff]
    %v1785 = vld [vmem:[#allocation4 + $0xe0] sm:$0xff]
    %v1786 = vld [vmem:[#allocation4 + $0xe8] sm:$0xff]
    %v1787 = vld [vmem:[#allocation4 + $0x130] sm:$0x1]
    %v1788 = vlaneseq
    %v1789 = vshrl.u32 %v1788, 7
    %v1790 = vsub.s32 0, %v1789
    %v1791 = vrot.slane %v1787, %v1790
    %v1793 = vsel %vm50, %v1781, 0
    %v1796 = vsel %vm50, %v1782, 0
    %1798 = vmatprep.subr.mxu0 0.0
    %1799 = vmatpush1.msra.mxu0 0.0
    %1800 = vmatprep.subr.mxu0 0.0
    %1801 = vmatpush1.msra.mxu0 0.0
    %1802 = vmatprep.subr.mxu0 0.0
    %1803 = vmatpush1.msra.mxu0 0.0
    %1804 = vmatprep.subr.mxu0 0.0
    %1805 = vmatpush1.msra.mxu0 0.0
    %1806 = vmatprep.subr.mxu0 0.0
    %1807 = vmatpush1.msra.mxu0 0.0
    %1808 = vmatprep.subr.mxu0 0.0
    %1809 = vmatpush1.msra.mxu0 0.0
    %1810 = vmatprep.subr.mxu0 0.0
    %1811 = vmatpush1.msra.mxu0 0.0
    %1812 = vmatprep.subr.mxu0 0.0
    %1813 = vmatpush1.msra.mxu0 0.0
    %1814 = vmatprep.subr.mxu0 0.0
    %1815 = vmatpush1.msra.mxu0 0.0
    %1816 = vmatprep.subr.mxu0 0.0
    %1817 = vmatpush1.msra.mxu0 0.0
    %1818 = vmatprep.subr.mxu0 0.0
    %1819 = vmatpush1.msra.mxu0 0.0
    %1820 = vmatprep.subr.mxu0 0.0
    %1821 = vmatpush1.msra.mxu0 0.0
    %1822 = vmatprep.subr.mxu0 0.0
    %1823 = vmatpush1.msra.mxu0 %v1786
    %1824 = vmatprep.subr.mxu0 0.0
    %1825 = vmatpush1.msra.mxu0 %v1785
    %1826 = vmatprep.subr.mxu0 0.0
    %1827 = vmatpush1.msra.mxu0 %v1784
    %1828 = vmatprep.subr.mxu0 0.0
    %1829 = vmatpush1.msra.mxu0 %v1783
    %1830 = vmatprep.subr.mxu0 0.0
    %1831 = vmatpush2.msra.mxu0 0.0
    %1832 = vmatprep.subr.mxu0 0.0
    %1833 = vmatpush2.msra.mxu0 0.0
    %1834 = vmatprep.subr.mxu0 0.0
    %1835 = vmatpush2.msra.mxu0 0.0
    %1836 = vmatprep.subr.mxu0 0.0
    %1837 = vmatpush2.msra.mxu0 0.0
    %1838 = vmatprep.subr.mxu0 0.0
    %1839 = vmatpush2.msra.mxu0 0.0
    %1840 = vmatprep.subr.mxu0 0.0
    %1841 = vmatpush2.msra.mxu0 0.0
    %1842 = vmatprep.subr.mxu0 0.0
    %1843 = vmatpush2.msra.mxu0 0.0
    %1844 = vmatprep.subr.mxu0 0.0
    %1845 = vmatpush2.msra.mxu0 0.0
    %1846 = vmatprep.subr.mxu0 0.0
    %1847 = vmatpush2.msra.mxu0 0.0
    %1848 = vmatprep.subr.mxu0 0.0
    %1849 = vmatpush2.msra.mxu0 0.0
    %1850 = vmatprep.subr.mxu0 0.0
    %1851 = vmatpush2.msra.mxu0 0.0
    %1852 = vmatprep.subr.mxu0 0.0
    %1853 = vmatpush2.msra.mxu0 0.0
    %1854 = vmatprep.subr.mxu0 0.0
    %1855 = vmatpush2.msra.mxu0 0.0
    %1856 = vmatprep.subr.mxu0 0.0
    %1857 = vmatpush2.msra.mxu0 0.0
    %1858 = vmatprep.subr.mxu0 0.0
    %1859 = vmatpush2.msra.mxu0 0.0
    %1860 = vmatprep.subr.mxu0 0.0
    %1861 = vmatpush2.msra.mxu0 0.0
    %1862 = vmatprep.mubr.f32.mxu0 0.0
    %1863 = vmatmul.mubr.f32.gmra.mxu0 %v1793
    %v1864 = vpop.f32.mrf.mxu0
    %v1865 = vadd.f32 %v1791, %v1864
    %v1866 = vpop.f32.mrf.mxu0
    %1867 = vmatprep.mubr.f32.mxu0 0.0
    %1868 = vmatmul.mubr.f32.gmra.mxu0 %v1796
    %v1869 = vpop.f32.mrf.mxu0
    %v1870 = vadd.f32 %v1791, %v1869
    %v1871 = vpop.f32.mrf.mxu0
    %1872 = vdwg.mxu0
    %v1873 = vmax.f32 %v1865, 0.0
    %v1874 = vmax.f32 %v1870, 0.0
    %v1875 = vld [vmem:[#allocation4 + $0xf0] sm:$0xff]
    %v1876 = vld [vmem:[#allocation4 + $0xf8] sm:$0xff]
    %v1877 = vld [vmem:[#allocation4 + $0x100] sm:$0xff]
    %v1878 = vld [vmem:[#allocation4 + $0x108] sm:$0xff]
    %v1879 = vld [vmem:[#allocation4 + $0x110] sm:$0xff]
    %v1880 = vld [vmem:[#allocation4 + $0x118] sm:$0xff]
    %v1881 = vld [vmem:[#allocation4 + $0x120] sm:$0xff]
    %v1882 = vld [vmem:[#allocation4 + $0x128] sm:$0xff]
    %v1883 = vld [vmem:[#allocation4 + $0x131] sm:$0x1]
    %v1884 = vlaneseq
    %v1885 = vshrl.u32 %v1884, 7
    %v1886 = vsub.s32 0, %v1885
    %v1887 = vrot.slane %v1883, %v1886
    %v1889 = vsel %vm950, %v1873, 0
    %v1892 = vsel %vm950, %v1874, 0
    %1894 = vmatprep.subr.mxu0 0.0
    %1895 = vmatpush1.msra.mxu0 0.0
    %1896 = vmatprep.subr.mxu0 0.0
    %1897 = vmatpush1.msra.mxu0 0.0
    %1898 = vmatprep.subr.mxu0 0.0
    %1899 = vmatpush1.msra.mxu0 0.0
    %1900 = vmatprep.subr.mxu0 0.0
    %1901 = vmatpush1.msra.mxu0 0.0
    %1902 = vmatprep.subr.mxu0 0.0
    %1903 = vmatpush1.msra.mxu0 0.0
    %1904 = vmatprep.subr.mxu0 0.0
    %1905 = vmatpush1.msra.mxu0 0.0
    %1906 = vmatprep.subr.mxu0 0.0
    %1907 = vmatpush1.msra.mxu0 0.0
    %1908 = vmatprep.subr.mxu0 0.0
    %1909 = vmatpush1.msra.mxu0 0.0
    %1910 = vmatprep.subr.mxu0 0.0
    %1911 = vmatpush1.msra.mxu0 %v1882
    %1912 = vmatprep.subr.mxu0 0.0
    %1913 = vmatpush1.msra.mxu0 %v1881
    %1914 = vmatprep.subr.mxu0 0.0
    %1915 = vmatpush1.msra.mxu0 %v1880
    %1916 = vmatprep.subr.mxu0 0.0
    %1917 = vmatpush1.msra.mxu0 %v1879
    %1918 = vmatprep.subr.mxu0 0.0
    %1919 = vmatpush1.msra.mxu0 %v1878
    %1920 = vmatprep.subr.mxu0 0.0
    %1921 = vmatpush1.msra.mxu0 %v1877
    %1922 = vmatprep.subr.mxu0 0.0
    %1923 = vmatpush1.msra.mxu0 %v1876
    %1924 = vmatprep.subr.mxu0 0.0
    %1925 = vmatpush1.msra.mxu0 %v1875
    %1926 = vmatprep.subr.mxu0 0.0
    %1927 = vmatpush2.msra.mxu0 0.0
    %1928 = vmatprep.subr.mxu0 0.0
    %1929 = vmatpush2.msra.mxu0 0.0
    %1930 = vmatprep.subr.mxu0 0.0
    %1931 = vmatpush2.msra.mxu0 0.0
    %1932 = vmatprep.subr.mxu0 0.0
    %1933 = vmatpush2.msra.mxu0 0.0
    %1934 = vmatprep.subr.mxu0 0.0
    %1935 = vmatpush2.msra.mxu0 0.0
    %1936 = vmatprep.subr.mxu0 0.0
    %1937 = vmatpush2.msra.mxu0 0.0
    %1938 = vmatprep.subr.mxu0 0.0
    %1939 = vmatpush2.msra.mxu0 0.0
    %1940 = vmatprep.subr.mxu0 0.0
    %1941 = vmatpush2.msra.mxu0 0.0
    %1942 = vmatprep.subr.mxu0 0.0
    %1943 = vmatpush2.msra.mxu0 0.0
    %1944 = vmatprep.subr.mxu0 0.0
    %1945 = vmatpush2.msra.mxu0 0.0
    %1946 = vmatprep.subr.mxu0 0.0
    %1947 = vmatpush2.msra.mxu0 0.0
    %1948 = vmatprep.subr.mxu0 0.0
    %1949 = vmatpush2.msra.mxu0 0.0
    %1950 = vmatprep.subr.mxu0 0.0
    %1951 = vmatpush2.msra.mxu0 0.0
    %1952 = vmatprep.subr.mxu0 0.0
    %1953 = vmatpush2.msra.mxu0 0.0
    %1954 = vmatprep.subr.mxu0 0.0
    %1955 = vmatpush2.msra.mxu0 0.0
    %1956 = vmatprep.subr.mxu0 0.0
    %1957 = vmatpush2.msra.mxu0 0.0
    %1958 = vmatprep.mubr.f32.mxu0 0.0
    %1959 = vmatmul.mubr.f32.gmra.mxu0 %v1889
    %v1960 = vpop.f32.mrf.mxu0
    %v1961 = vadd.f32 %v1887, %v1960
    %v1962 = vpop.f32.mrf.mxu0
    %1963 = vmatprep.mubr.f32.mxu0 0.0
    %1964 = vmatmul.mubr.f32.gmra.mxu0 %v1892
    %v1965 = vpop.f32.mrf.mxu0
    %v1966 = vadd.f32 %v1887, %v1965
    %v1967 = vpop.f32.mrf.mxu0
    %1968 = vdwg.mxu0
    %v1969 = vadd.f32 %v1781, %v1961
    %v1970 = vadd.f32 %v1782, %v1966
    %v1971 = vld [vmem:[#allocation4 + $0x135] sm:$0x1]
    %v1972 = vld [vmem:[#allocation4 + $0x136] sm:$0x1]
    %v1973 = vsel %vm50, %v1969, 0.0
    %1974 = vadd.xlane.f32.xlu0 %v1973
    %v1975 = vpop.xlane.xlu0 %1974
    %v1976 = vsel %vm50, %v1970, 0.0
    %1977 = vadd.xlane.f32.xlu0 %v1976
    %v1978 = vpop.xlane.xlu0 %1977
    %v1979 = vmul.f32 %v1975, %v812
    %v1980 = vmul.f32 %v1978, %v812
    %v1981 = vsub.f32 %v1969, %v1979
    %v1982 = vsub.f32 %v1970, %v1980
    %v1983 = vmul.f32 %v1981, %v1981
    %v1984 = vmul.f32 %v1982, %v1982
    %v1985 = vsel %vm50, %v1983, 0.0
    %1986 = vadd.xlane.f32.xlu0 %v1985
    %v1987 = vpop.xlane.xlu0 %1986
    %v1988 = vsel %vm50, %v1984, 0.0
    %1989 = vadd.xlane.f32.xlu0 %v1988
    %v1990 = vpop.xlane.xlu0 %1989
    %v1991 = vmul.f32 %v1987, %v812
    %v1992 = vmul.f32 %v1990, %v812
    %v1993 = vadd.f32 %v1991, 1e-05
    %v1994 = vadd.f32 %v1992, 1e-05
    %v1995 = vrsqrt.pop %v1993
    %v1996 = vrsqrt.pop %v1994
    %v1997 = vmul.f32 %v1981, %v1995
    %v1998 = vmul.f32 %v1982, %v1996
    %v1999 = vlaneseq
    %v2000 = vshrl.u32 %v1999, 7
    %v2001 = vsub.s32 0, %v2000
    %v2002 = vrot.slane %v1971, %v2001
    %v2003 = vmul.f32 %v1997, %v2002
    %v2004 = vmul.f32 %v1998, %v2002
    %v2005 = vlaneseq
    %v2006 = vshrl.u32 %v2005, 7
    %v2007 = vsub.s32 0, %v2006
    %v2008 = vrot.slane %v1972, %v2007
    %v2009 = vadd.f32 %v2003, %v2008
    %v2010 = vadd.f32 %v2004, %v2008
    %v2011 = vld [vmem:[#allocation4 + $0x40] sm:$0xff]
    %v2012 = vld [vmem:[#allocation4 + $0x48] sm:$0xff]
    %v2013 = vld [vmem:[#allocation4 + $0x50] sm:$0xff]
    %v2014 = vld [vmem:[#allocation4 + $0x58] sm:$0xff]
    %v2015 = vld [vmem:[#allocation4 + $0x60] sm:$0x1]
    %v2016 = vlaneseq
    %v2017 = vshrl.u32 %v2016, 7
    %v2018 = vsub.s32 0, %v2017
    %v2019 = vrot.slane %v2015, %v2018
    %v2021 = vsel %vm50, %v2009, 0
    %v2024 = vsel %vm50, %v2010, 0
    %2026 = vmatprep.subr.mxu0 0.0
    %2027 = vmatpush1.msra.mxu0 0.0
    %2028 = vmatprep.subr.mxu0 0.0
    %2029 = vmatpush1.msra.mxu0 0.0
    %2030 = vmatprep.subr.mxu0 0.0
    %2031 = vmatpush1.msra.mxu0 0.0
    %2032 = vmatprep.subr.mxu0 0.0
    %2033 = vmatpush1.msra.mxu0 0.0
    %2034 = vmatprep.subr.mxu0 0.0
    %2035 = vmatpush1.msra.mxu0 0.0
    %2036 = vmatprep.subr.mxu0 0.0
    %2037 = vmatpush1.msra.mxu0 0.0
    %2038 = vmatprep.subr.mxu0 0.0
    %2039 = vmatpush1.msra.mxu0 0.0
    %2040 = vmatprep.subr.mxu0 0.0
    %2041 = vmatpush1.msra.mxu0 0.0
    %2042 = vmatprep.subr.mxu0 0.0
    %2043 = vmatpush1.msra.mxu0 0.0
    %2044 = vmatprep.subr.mxu0 0.0
    %2045 = vmatpush1.msra.mxu0 0.0
    %2046 = vmatprep.subr.mxu0 0.0
    %2047 = vmatpush1.msra.mxu0 0.0
    %2048 = vmatprep.subr.mxu0 0.0
    %2049 = vmatpush1.msra.mxu0 0.0
    %2050 = vmatprep.subr.mxu0 0.0
    %2051 = vmatpush1.msra.mxu0 %v2014
    %2052 = vmatprep.subr.mxu0 0.0
    %2053 = vmatpush1.msra.mxu0 %v2013
    %2054 = vmatprep.subr.mxu0 0.0
    %2055 = vmatpush1.msra.mxu0 %v2012
    %2056 = vmatprep.subr.mxu0 0.0
    %2057 = vmatpush1.msra.mxu0 %v2011
    %2058 = vmatprep.subr.mxu0 0.0
    %2059 = vmatpush2.msra.mxu0 0.0
    %2060 = vmatprep.subr.mxu0 0.0
    %2061 = vmatpush2.msra.mxu0 0.0
    %2062 = vmatprep.subr.mxu0 0.0
    %2063 = vmatpush2.msra.mxu0 0.0
    %2064 = vmatprep.subr.mxu0 0.0
    %2065 = vmatpush2.msra.mxu0 0.0
    %2066 = vmatprep.subr.mxu0 0.0
    %2067 = vmatpush2.msra.mxu0 0.0
    %2068 = vmatprep.subr.mxu0 0.0
    %2069 = vmatpush2.msra.mxu0 0.0
    %2070 = vmatprep.subr.mxu0 0.0
    %2071 = vmatpush2.msra.mxu0 0.0
    %2072 = vmatprep.subr.mxu0 0.0
    %2073 = vmatpush2.msra.mxu0 0.0
    %2074 = vmatprep.subr.mxu0 0.0
    %2075 = vmatpush2.msra.mxu0 0.0
    %2076 = vmatprep.subr.mxu0 0.0
    %2077 = vmatpush2.msra.mxu0 0.0
    %2078 = vmatprep.subr.mxu0 0.0
    %2079 = vmatpush2.msra.mxu0 0.0
    %2080 = vmatprep.subr.mxu0 0.0
    %2081 = vmatpush2.msra.mxu0 0.0
    %2082 = vmatprep.subr.mxu0 0.0
    %2083 = vmatpush2.msra.mxu0 0.0
    %2084 = vmatprep.subr.mxu0 0.0
    %2085 = vmatpush2.msra.mxu0 0.0
    %2086 = vmatprep.subr.mxu0 0.0
    %2087 = vmatpush2.msra.mxu0 0.0
    %2088 = vmatprep.subr.mxu0 0.0
    %2089 = vmatpush2.msra.mxu0 0.0
    %2090 = vmatprep.mubr.f32.mxu0 0.0
    %2091 = vmatmul.mubr.f32.gmra.mxu0 %v2021
    %v2092 = vpop.f32.mrf.mxu0
    %v2093 = vadd.f32 %v2019, %v2092
    %v2094 = vpop.f32.mrf.mxu0
    %2095 = vmatprep.mubr.f32.mxu0 0.0
    %2096 = vmatmul.mubr.f32.gmra.mxu0 %v2024
    %v2097 = vpop.f32.mrf.mxu0
    %v2098 = vadd.f32 %v2019, %v2097
    %v2099 = vpop.f32.mrf.mxu0
    %2100 = vdwg.mxu0
    %2101 = vmax.xlane.f32.xlu0 %v2093
    %v2102 = vpop.xlane.xlu0 %2101
    %2103 = vmax.xlane.f32.xlu0 %v2098
    %v2104 = vpop.xlane.xlu0 %2103
    %v2105 = vsub.f32 %v2093, %v2102
    %v2106 = vsub.f32 %v2098, %v2104
    %v2107 = vmul.f32 %v2105, 1.442695
    %v2108 = vpow.pop %v2107
    %v2109 = vmul.f32 %v2106, 1.442695
    %v2110 = vpow.pop %v2109
    %2111 = vadd.xlane.f32.xlu0 %v2108
    %v2112 = vpop.xlane.xlu0 %2111
    %2113 = vadd.xlane.f32.xlu0 %v2110
    %v2114 = vpop.xlane.xlu0 %2113
    %v2115 = vlog2.pop %v2112
    %v2116 = vmul.f32 %v2115, 0.6931472
    %v2117 = vlog2.pop %v2114
    %v2118 = vmul.f32 %v2117, 0.6931472
    %v2119 = vsub.f32 %v2105, %v2116
    %v2120 = vsub.f32 %v2106, %v2118
    %2121 = vst [vmem:[%s3] sm:$0xff] %v2119
    %2122 = vst [vmem:[%s3 + $0x8] sm:$0xff] %v2120
    // Predicated region
    $region22: #{transformer_forward.1} parent=1 // pred_check
      _
    $region23: #{transformer_forward.1} parent=1 // pred_check_branch
      %2124 = sbr.rel (0) target = $region25
    $region24: #{transformer_forward.1} parent=1 // pred_region
      _
    $region25: #{transformer_forward.1} parent=1 // pred_fallthru
      _
    // Predicated region
    $region26: #{transformer_forward.1} parent=1 // pred_check
      _
    $region27: #{transformer_forward.1} parent=1 // pred_check_branch
      %2126 = sbr.rel (0) target = $region29
    $region28: #{transformer_forward.1} parent=1 // pred_region
      _
    $region29: #{transformer_forward.1} parent=1 // pred_fallthru
      _
    %2127 = vsyncpa [#allocation3], 1
    %2128 = vsyncpa [#allocation5], 1

</llo_original>
